<compile_context>
chip_gen: v7x
topology: tpu7x:2x2x1
jax: 0.10.0
libtpu: 0.0.40
codegen_flags: <defaults>
</compile_context>

<pallas_src>
import functools
import math

import numpy as np
import jax
import jax.numpy as jnp
from jax.experimental import pallas as pl
from jax.experimental.pallas import tpu as pltpu

_SQRT_2_OVER_PI = math.sqrt(2.0 / math.pi)


def _gelu(x):
    return 0.5 * x * (1.0 + jnp.tanh(_SQRT_2_OVER_PI * (x + 0.044715 * x * x * x)))


def _downsample_kernel(x_ref, mask_ref, t_ref,
                       w1a_ref, w1b_ref, g1_ref, b1_ref,
                       w2a_ref, w2b_ref, g2_ref, b2_ref,
                       wt_ref, bt_ref,
                       o_ref, *, wp):
    b = pl.program_id(0)
    f32 = jnp.float32

    pooled = x_ref[0]                       # (c_in, S): pooled map, spatial on lanes
    masks = mask_ref[...]                   # (9, S): 0/1 boundary masks, shared by all convs

    offs = [(dh, dw) for dh in (-1, 0, 1) for dw in (-1, 0, 1)]

    def conv3x3(h, w_ref):
        # h: (ci, S); w_ref: (co, 9*ci).  3x3 SAME conv as a single im2col MXU
        # matmul; taps are lane rolls + masks (no padded scratch, no halo zeroing).
        taps = []
        for k, (dh, dw) in enumerate(offs):
            shift = dh * wp + dw
            sh = h if shift == 0 else jnp.roll(h, -shift, axis=1)
            taps.append(sh * masks[k:k + 1, :])
        im2col = jnp.concatenate(taps, axis=0)                       # (9*ci, S)
        return jnp.dot(w_ref[...], im2col, preferred_element_type=f32)  # (co, S)

    def group_norm(h, g, beta):
        # GroupNorm(1, C): normalize over the whole (C, S) sample; one-pass stats.
        inv_n = 1.0 / (h.shape[0] * h.shape[1])
        s1 = jnp.sum(jnp.sum(h, axis=1, keepdims=True), axis=0, keepdims=True) * inv_n
        s2 = jnp.sum(jnp.sum(h * h, axis=1, keepdims=True), axis=0, keepdims=True) * inv_n
        inv = jax.lax.rsqrt(s2 - s1 * s1 + 1e-5)
        return (h - s1) * inv * g + beta

    g1 = g1_ref[...]; b1 = b1_ref[...]      # (c_in, 1)
    g2 = g2_ref[...]; b2 = b2_ref[...]      # (c_out, 1)

    # ---- DoubleConvolution #1 (in -> in, residual=True); shared GroupNorm affine.
    h = conv3x3(pooled, w1a_ref)
    h = _gelu(group_norm(h, g1, b1))
    h = conv3x3(h, w1b_ref)
    h = _gelu(group_norm(h, g1, b1) + pooled)

    # ---- DoubleConvolution #2 (in -> out).
    y = conv3x3(h, w2a_ref)
    y = _gelu(group_norm(y, g2, b2))
    y = conv3x3(y, w2b_ref)
    y = _gelu(group_norm(y, g2, b2))

    # ---- Time embedding: Linear(SiLU(t)) for all samples (tiny), then one-hot
    # select this sample's column -> (c_out, 1), broadcast over spatial lanes.
    tv = t_ref[...]                                          # (T, B)
    silu_t = tv * (1.0 / (1.0 + jnp.exp(-tv)))
    emb_all = jnp.dot(wt_ref[...], silu_t, preferred_element_type=f32) + bt_ref[...]  # (c_out, B)
    sel = (jax.lax.broadcasted_iota(jnp.int32, (1, emb_all.shape[1]), 1) == b).astype(f32)
    emb = jnp.sum(emb_all * sel, axis=1, keepdims=True)      # (c_out, 1)

    o_ref[0] = (y + emb).astype(o_ref.dtype)


def downsample_forward(x, t, params, cond=None):
    """Pallas equivalent of DownSample.forward(x, t).  x: (B, C_in, H, W) NCHW."""
    if cond is not None:
        # TODO(synk): optional cond / cond_emb_layer concat branch not implemented.
        raise NotImplementedError("cond path not implemented")

    B, c_in, H, W = x.shape
    assert H % 2 == 0 and W % 2 == 0, "spatial dims must be even for MaxPool2d(2,2)"
    hp, wp = H // 2, W // 2
    S = hp * wp
    c_out = params["w2b"].shape[-1]
    T = params["wt"].shape[0]

    # torch: if len(t.shape) == 1: t = t[None, :]  (then broadcasts over batch)
    t = jnp.asarray(t, jnp.float32)
    if t.ndim == 1:
        t = t[None, :]
    if t.shape[0] == 1 and B > 1:
        t = jnp.broadcast_to(t, (B, T))
    t_t = jnp.transpose(t)                                   # (T, B)

    # MaxPool2d(2,2) as a cheap XLA reduce on the raw NCHW layout (no transpose),
    # then a FREE reshape to (B, c_in, hp*wp) so the kernel is lane-dense.
    pooled = (x.astype(jnp.float32)
               .reshape(B, c_in, hp, 2, wp, 2)
               .max(axis=(3, 5)))
    xk = pooled.reshape(B, c_in, S)

    # 3x3 tap boundary masks (static, shared by all four convolutions).
    ii, jj = np.meshgrid(np.arange(hp), np.arange(wp), indexing="ij")
    ii = ii.reshape(-1); jj = jj.reshape(-1)
    mask_np = np.stack(
        [((ii + dh >= 0) & (ii + dh < hp) & (jj + dw >= 0) & (jj + dw < wp))
         for dh in (-1, 0, 1) for dw in (-1, 0, 1)]).astype(np.float32)      # (9, S)
    mask_arr = jnp.asarray(mask_np)

    def wconv(w):   # (3, 3, ci, co) -> (co, 9*ci), tap-major then channel
        w = jnp.asarray(w, jnp.float32)
        ci, co = w.shape[2], w.shape[3]
        return jnp.transpose(w, (3, 0, 1, 2)).reshape(co, 9 * ci)

    def col(v):     # (C,) -> (C, 1)
        return jnp.asarray(v, jnp.float32).reshape(-1, 1)

    wt_t = jnp.transpose(jnp.asarray(params["wt"], jnp.float32))             # (c_out, T)

    args = (xk, mask_arr, t_t,
            wconv(params["w1a"]), wconv(params["w1b"]), col(params["g1"]), col(params["b1"]),
            wconv(params["w2a"]), wconv(params["w2b"]), col(params["g2"]), col(params["b2"]),
            wt_t, col(params["bt"]))

    def full2(shape):
        return pl.BlockSpec(shape, lambda b: (0, 0))

    in_specs = [
        pl.BlockSpec((1, c_in, S), lambda b: (b, 0, 0)),
        full2((9, S)),
        full2((T, B)),
        full2((c_in, 9 * c_in)), full2((c_in, 9 * c_in)), full2((c_in, 1)), full2((c_in, 1)),
        full2((c_out, 9 * c_in)), full2((c_out, 9 * c_out)), full2((c_out, 1)), full2((c_out, 1)),
        full2((c_out, T)), full2((c_out, 1)),
    ]
    out_specs = pl.BlockSpec((1, c_out, S), lambda b: (b, 0, 0))

    kernel = functools.partial(_downsample_kernel, wp=wp)

    y = pl.pallas_call(
        kernel,
        out_shape=jax.ShapeDtypeStruct((B, c_out, S), jnp.float32),
        grid_spec=pltpu.PrefetchScalarGridSpec(
            num_scalar_prefetch=0,
            grid=(B,),
            in_specs=in_specs,
            out_specs=out_specs,
        ),
        compiler_params=pltpu.CompilerParams(
            dimension_semantics=("parallel",),
            vmem_limit_bytes=32 * 1024 * 1024),
    )(*args)

    # Output slab is already NCHW-ordered: free reshape, no transpose.
    return y.reshape(B, c_out, hp, wp)


# ---------------------------------------------------------------------------
# Pure-JAX reference (same math: tanh-GELU, eps=1e-5 GroupNorm) for validation.
# ---------------------------------------------------------------------------
def _ref_downsample(x, t, p):
    B, C, H, W = x.shape
    T = p["wt"].shape[0]
    xh = jnp.transpose(x.astype(jnp.float32), (0, 2, 3, 1))       # NHWC
    xh = xh.reshape(B, H // 2, 2, W // 2, 2, C).max(axis=(2, 4))  # maxpool 2x2/2

    def conv(h, w):
        return jax.lax.conv_general_dilated(
            h, w.astype(jnp.float32), window_strides=(1, 1), padding="SAME",
            dimension_numbers=("NHWC", "HWIO", "NHWC"),
            precision=jax.lax.Precision.HIGHEST)

    def gn(h, g, b_):
        m = h.mean(axis=(1, 2, 3), keepdims=True)
        v = ((h - m) ** 2).mean(axis=(1, 2, 3), keepdims=True)
        return (h - m) * jax.lax.rsqrt(v + 1e-5) * g + b_

    # DoubleConv #1 (residual)
    h = conv(xh, p["w1a"]); h = _gelu(gn(h, p["g1"], p["b1"]))
    h = conv(h, p["w1b"]); h = gn(h, p["g1"], p["b1"]); h = _gelu(h + xh)
    # DoubleConv #2
    y = conv(h, p["w2a"]); y = _gelu(gn(y, p["g2"], p["b2"]))
    y = conv(y, p["w2b"]); y = _gelu(gn(y, p["g2"], p["b2"]))
    # time embedding
    tt = jnp.asarray(t, jnp.float32)
    if tt.ndim == 1:
        tt = tt[None, :]
    if tt.shape[0] == 1 and B > 1:
        tt = jnp.broadcast_to(tt, (B, T))
    silu = tt * (1.0 / (1.0 + jnp.exp(-tt)))
    emb = silu @ p["wt"].astype(jnp.float32) + p["bt"].astype(jnp.float32)
    y = y + emb[:, None, None, :]
    return jnp.transpose(y, (0, 3, 1, 2))


if __name__ == "__main__":
    B, C_IN, C_OUT, H, W, T_DIM = 2, 4, 8, 16, 16, 32

    keys = jax.random.split(jax.random.PRNGKey(0), 12)
    x = jax.random.normal(keys[0], (B, C_IN, H, W), jnp.float32)
    t = jax.random.normal(keys[1], (B, T_DIM), jnp.float32)
    params = {
        "w1a": 0.25 * jax.random.normal(keys[2], (3, 3, C_IN, C_IN), jnp.float32),
        "w1b": 0.25 * jax.random.normal(keys[3], (3, 3, C_IN, C_IN), jnp.float32),
        "g1": 1.0 + 0.1 * jax.random.normal(keys[4], (C_IN,), jnp.float32),
        "b1": 0.1 * jax.random.normal(keys[5], (C_IN,), jnp.float32),
        "w2a": 0.25 * jax.random.normal(keys[6], (3, 3, C_IN, C_OUT), jnp.float32),
        "w2b": 0.25 * jax.random.normal(keys[7], (3, 3, C_OUT, C_OUT), jnp.float32),
        "g2": 1.0 + 0.1 * jax.random.normal(keys[8], (C_OUT,), jnp.float32),
        "b2": 0.1 * jax.random.normal(keys[9], (C_OUT,), jnp.float32),
        "wt": 0.2 * jax.random.normal(keys[10], (T_DIM, C_OUT), jnp.float32),
        "bt": 0.1 * jax.random.normal(keys[11], (C_OUT,), jnp.float32),
    }

    out = downsample_forward(x, t, params)
    out = jax.block_until_ready(out)
    assert out.shape == (B, C_OUT, H // 2, W // 2), out.shape

    ref = jax.block_until_ready(_ref_downsample(x, t, params))
    max_err = float(jnp.max(jnp.abs(out - ref)))
    assert jnp.allclose(out, ref, atol=5e-2, rtol=5e-2), f"mismatch vs reference, max_err={max_err}"

    print("KERNEL_OK")
</pallas_src>

<mosaic_0001>
module attributes {stable_mosaic.version = 11 : i64} {
  func.func @_downsample_kernel(%arg0: i32, %arg1: memref<1x4x64xf32, #tpu.memory_space<vmem>>, %arg2: memref<9x64xf32, #tpu.memory_space<vmem>>, %arg3: memref<32x2xf32, #tpu.memory_space<vmem>>, %arg4: memref<4x36xf32, #tpu.memory_space<vmem>>, %arg5: memref<4x36xf32, #tpu.memory_space<vmem>>, %arg6: memref<4x1xf32, #tpu.memory_space<vmem>>, %arg7: memref<4x1xf32, #tpu.memory_space<vmem>>, %arg8: memref<8x36xf32, #tpu.memory_space<vmem>>, %arg9: memref<8x72xf32, #tpu.memory_space<vmem>>, %arg10: memref<8x1xf32, #tpu.memory_space<vmem>>, %arg11: memref<8x1xf32, #tpu.memory_space<vmem>>, %arg12: memref<8x32xf32, #tpu.memory_space<vmem>>, %arg13: memref<8x1xf32, #tpu.memory_space<vmem>>, %arg14: memref<1x8x64xf32, #tpu.memory_space<vmem>>) attributes {dimension_semantics = [#tpu.dimension_semantics<parallel>], iteration_bounds = array<i64: 2>, scalar_prefetch = 0 : i64, scratch_operands = 0 : i64, tpu.core_type = #tpu.core_type<tc>, window_params = [{transform_indices = @transform_0, window_bounds = array<i64: 1, 4, 64>}, {pipeline_mode = #tpu.pipeline_mode<synchronous>, transform_indices = @transform_1, window_bounds = array<i64: 9, 64>}, {pipeline_mode = #tpu.pipeline_mode<synchronous>, transform_indices = @transform_2, window_bounds = array<i64: 32, 2>}, {pipeline_mode = #tpu.pipeline_mode<synchronous>, transform_indices = @transform_3, window_bounds = array<i64: 4, 36>}, {pipeline_mode = #tpu.pipeline_mode<synchronous>, transform_indices = @transform_4, window_bounds = array<i64: 4, 36>}, {pipeline_mode = #tpu.pipeline_mode<synchronous>, transform_indices = @transform_5, window_bounds = array<i64: 4, 1>}, {pipeline_mode = #tpu.pipeline_mode<synchronous>, transform_indices = @transform_6, window_bounds = array<i64: 4, 1>}, {pipeline_mode = #tpu.pipeline_mode<synchronous>, transform_indices = @transform_7, window_bounds = array<i64: 8, 36>}, {pipeline_mode = #tpu.pipeline_mode<synchronous>, transform_indices = @transform_8, window_bounds = array<i64: 8, 72>}, {pipeline_mode = #tpu.pipeline_mode<synchronous>, transform_indices = @transform_9, window_bounds = array<i64: 8, 1>}, {pipeline_mode = #tpu.pipeline_mode<synchronous>, transform_indices = @transform_10, window_bounds = array<i64: 8, 1>}, {pipeline_mode = #tpu.pipeline_mode<synchronous>, transform_indices = @transform_11, window_bounds = array<i64: 8, 32>}, {pipeline_mode = #tpu.pipeline_mode<synchronous>, transform_indices = @transform_12, window_bounds = array<i64: 8, 1>}, {transform_indices = @transform_13, window_bounds = array<i64: 1, 8, 64>}]} {
    %c0 = arith.constant 0 : index
    %c0_0 = arith.constant 0 : index
    %c0_1 = arith.constant 0 : index
    %0 = vector.load %arg1[%c0, %c0_0, %c0_1] : memref<1x4x64xf32, #tpu.memory_space<vmem>>, vector<1x4x64xf32>
    %1 = vector.shape_cast %0 : vector<1x4x64xf32> to vector<4x64xf32>
    %c0_2 = arith.constant 0 : index
    %c0_3 = arith.constant 0 : index
    %2 = vector.load %arg2[%c0_2, %c0_3] : memref<9x64xf32, #tpu.memory_space<vmem>>, vector<9x64xf32>
    %c0_4 = arith.constant 0 : index
    %c0_5 = arith.constant 0 : index
    %3 = vector.load %arg6[%c0_4, %c0_5] : memref<4x1xf32, #tpu.memory_space<vmem>>, vector<4x1xf32>
    %c0_6 = arith.constant 0 : index
    %c0_7 = arith.constant 0 : index
    %4 = vector.load %arg7[%c0_6, %c0_7] : memref<4x1xf32, #tpu.memory_space<vmem>>, vector<4x1xf32>
    %c0_8 = arith.constant 0 : index
    %c0_9 = arith.constant 0 : index
    %5 = vector.load %arg10[%c0_8, %c0_9] : memref<8x1xf32, #tpu.memory_space<vmem>>, vector<8x1xf32>
    %c0_10 = arith.constant 0 : index
    %c0_11 = arith.constant 0 : index
    %6 = vector.load %arg11[%c0_10, %c0_11] : memref<8x1xf32, #tpu.memory_space<vmem>>, vector<8x1xf32>
    %7 = vector.extract_strided_slice %1 {offsets = [0, 55], sizes = [4, 9], strides = [1, 1]} : vector<4x64xf32> to vector<4x9xf32>
    %8 = vector.extract_strided_slice %1 {offsets = [0, 0], sizes = [4, 55], strides = [1, 1]} : vector<4x64xf32> to vector<4x55xf32>
    %9 = tpu.concatenate %7, %8 in 1 : vector<4x9xf32>, vector<4x55xf32> -> vector<4x64xf32>
    %10 = vector.extract_strided_slice %2 {offsets = [0, 0], sizes = [1, 64], strides = [1, 1]} : vector<9x64xf32> to vector<1x64xf32>
    %11 = vector.broadcast %10 : vector<1x64xf32> to vector<4x64xf32>
    %12 = arith.mulf %9, %11 : vector<4x64xf32>
    %13 = vector.extract_strided_slice %1 {offsets = [0, 56], sizes = [4, 8], strides = [1, 1]} : vector<4x64xf32> to vector<4x8xf32>
    %14 = vector.extract_strided_slice %1 {offsets = [0, 0], sizes = [4, 56], strides = [1, 1]} : vector<4x64xf32> to vector<4x56xf32>
    %15 = tpu.concatenate %13, %14 in 1 : vector<4x8xf32>, vector<4x56xf32> -> vector<4x64xf32>
    %16 = vector.extract_strided_slice %2 {offsets = [1, 0], sizes = [1, 64], strides = [1, 1]} : vector<9x64xf32> to vector<1x64xf32>
    %17 = vector.broadcast %16 : vector<1x64xf32> to vector<4x64xf32>
    %18 = arith.mulf %15, %17 : vector<4x64xf32>
    %19 = vector.extract_strided_slice %1 {offsets = [0, 57], sizes = [4, 7], strides = [1, 1]} : vector<4x64xf32> to vector<4x7xf32>
    %20 = vector.extract_strided_slice %1 {offsets = [0, 0], sizes = [4, 57], strides = [1, 1]} : vector<4x64xf32> to vector<4x57xf32>
    %21 = tpu.concatenate %19, %20 in 1 : vector<4x7xf32>, vector<4x57xf32> -> vector<4x64xf32>
    %22 = vector.extract_strided_slice %2 {offsets = [2, 0], sizes = [1, 64], strides = [1, 1]} : vector<9x64xf32> to vector<1x64xf32>
    %23 = vector.broadcast %22 : vector<1x64xf32> to vector<4x64xf32>
    %24 = arith.mulf %21, %23 : vector<4x64xf32>
    %25 = vector.extract_strided_slice %1 {offsets = [0, 63], sizes = [4, 1], strides = [1, 1]} : vector<4x64xf32> to vector<4x1xf32>
    %26 = vector.extract_strided_slice %1 {offsets = [0, 0], sizes = [4, 63], strides = [1, 1]} : vector<4x64xf32> to vector<4x63xf32>
    %27 = tpu.concatenate %25, %26 in 1 : vector<4x1xf32>, vector<4x63xf32> -> vector<4x64xf32>
    %28 = vector.extract_strided_slice %2 {offsets = [3, 0], sizes = [1, 64], strides = [1, 1]} : vector<9x64xf32> to vector<1x64xf32>
    %29 = vector.broadcast %28 : vector<1x64xf32> to vector<4x64xf32>
    %30 = arith.mulf %27, %29 : vector<4x64xf32>
    %31 = vector.extract_strided_slice %2 {offsets = [4, 0], sizes = [1, 64], strides = [1, 1]} : vector<9x64xf32> to vector<1x64xf32>
    %32 = vector.broadcast %31 : vector<1x64xf32> to vector<4x64xf32>
    %33 = arith.mulf %1, %32 : vector<4x64xf32>
    %34 = vector.extract_strided_slice %1 {offsets = [0, 1], sizes = [4, 63], strides = [1, 1]} : vector<4x64xf32> to vector<4x63xf32>
    %35 = vector.extract_strided_slice %1 {offsets = [0, 0], sizes = [4, 1], strides = [1, 1]} : vector<4x64xf32> to vector<4x1xf32>
    %36 = tpu.concatenate %34, %35 in 1 : vector<4x63xf32>, vector<4x1xf32> -> vector<4x64xf32>
    %37 = vector.extract_strided_slice %2 {offsets = [5, 0], sizes = [1, 64], strides = [1, 1]} : vector<9x64xf32> to vector<1x64xf32>
    %38 = vector.broadcast %37 : vector<1x64xf32> to vector<4x64xf32>
    %39 = arith.mulf %36, %38 : vector<4x64xf32>
    %40 = vector.extract_strided_slice %1 {offsets = [0, 7], sizes = [4, 57], strides = [1, 1]} : vector<4x64xf32> to vector<4x57xf32>
    %41 = vector.extract_strided_slice %1 {offsets = [0, 0], sizes = [4, 7], strides = [1, 1]} : vector<4x64xf32> to vector<4x7xf32>
    %42 = tpu.concatenate %40, %41 in 1 : vector<4x57xf32>, vector<4x7xf32> -> vector<4x64xf32>
    %43 = vector.extract_strided_slice %2 {offsets = [6, 0], sizes = [1, 64], strides = [1, 1]} : vector<9x64xf32> to vector<1x64xf32>
    %44 = vector.broadcast %43 : vector<1x64xf32> to vector<4x64xf32>
    %45 = arith.mulf %42, %44 : vector<4x64xf32>
    %46 = vector.extract_strided_slice %1 {offsets = [0, 8], sizes = [4, 56], strides = [1, 1]} : vector<4x64xf32> to vector<4x56xf32>
    %47 = vector.extract_strided_slice %1 {offsets = [0, 0], sizes = [4, 8], strides = [1, 1]} : vector<4x64xf32> to vector<4x8xf32>
    %48 = tpu.concatenate %46, %47 in 1 : vector<4x56xf32>, vector<4x8xf32> -> vector<4x64xf32>
    %49 = vector.extract_strided_slice %2 {offsets = [7, 0], sizes = [1, 64], strides = [1, 1]} : vector<9x64xf32> to vector<1x64xf32>
    %50 = vector.broadcast %49 : vector<1x64xf32> to vector<4x64xf32>
    %51 = arith.mulf %48, %50 : vector<4x64xf32>
    %52 = vector.extract_strided_slice %1 {offsets = [0, 9], sizes = [4, 55], strides = [1, 1]} : vector<4x64xf32> to vector<4x55xf32>
    %53 = vector.extract_strided_slice %1 {offsets = [0, 0], sizes = [4, 9], strides = [1, 1]} : vector<4x64xf32> to vector<4x9xf32>
    %54 = tpu.concatenate %52, %53 in 1 : vector<4x55xf32>, vector<4x9xf32> -> vector<4x64xf32>
    %55 = vector.extract_strided_slice %2 {offsets = [8, 0], sizes = [1, 64], strides = [1, 1]} : vector<9x64xf32> to vector<1x64xf32>
    %56 = vector.broadcast %55 : vector<1x64xf32> to vector<4x64xf32>
    %57 = arith.mulf %54, %56 : vector<4x64xf32>
    %58 = tpu.concatenate %12, %18, %24, %30, %33, %39, %45, %51, %57 in 0 : vector<4x64xf32>, vector<4x64xf32>, vector<4x64xf32>, vector<4x64xf32>, vector<4x64xf32>, vector<4x64xf32>, vector<4x64xf32>, vector<4x64xf32>, vector<4x64xf32> -> vector<36x64xf32>
    %c0_12 = arith.constant 0 : index
    %c0_13 = arith.constant 0 : index
    %59 = vector.load %arg4[%c0_12, %c0_13] : memref<4x36xf32, #tpu.memory_space<vmem>>, vector<4x36xf32>
    %cst = arith.constant dense<0.000000e+00> : vector<4x64xf32>
    %60 = tpu.matmul %59, %58, %cst {dimension_numbers = #tpu.dot_dimension_numbers<[1], [0], [0], [1], [0, 0, 1, 1], [], []>} : vector<4x36xf32>, vector<36x64xf32>, vector<4x64xf32> -> vector<4x64xf32>
    %cst_14 = arith.constant dense<0.000000e+00> : vector<4xf32>
    %61 = vector.multi_reduction <add>, %60, %cst_14 [1] : vector<4x64xf32> to vector<4xf32>
    %62 = vector.shape_cast %61 : vector<4xf32> to vector<4x1xf32>
    %cst_15 = arith.constant dense<0.000000e+00> : vector<1xf32>
    %63 = vector.multi_reduction <add>, %62, %cst_15 [0] : vector<4x1xf32> to vector<1xf32>
    %64 = vector.shape_cast %63 : vector<1xf32> to vector<1x1xf32>
    %cst_16 = arith.constant 3.906250e-03 : f32
    %65 = vector.broadcast %cst_16 : f32 to vector<1x1xf32>
    %66 = arith.mulf %64, %65 : vector<1x1xf32>
    %67 = arith.mulf %60, %60 : vector<4x64xf32>
    %cst_17 = arith.constant dense<0.000000e+00> : vector<4xf32>
    %68 = vector.multi_reduction <add>, %67, %cst_17 [1] : vector<4x64xf32> to vector<4xf32>
    %69 = vector.shape_cast %68 : vector<4xf32> to vector<4x1xf32>
    %cst_18 = arith.constant dense<0.000000e+00> : vector<1xf32>
    %70 = vector.multi_reduction <add>, %69, %cst_18 [0] : vector<4x1xf32> to vector<1xf32>
    %71 = vector.shape_cast %70 : vector<1xf32> to vector<1x1xf32>
    %cst_19 = arith.constant 3.906250e-03 : f32
    %72 = vector.broadcast %cst_19 : f32 to vector<1x1xf32>
    %73 = arith.mulf %71, %72 : vector<1x1xf32>
    %74 = arith.mulf %66, %66 : vector<1x1xf32>
    %75 = arith.subf %73, %74 : vector<1x1xf32>
    %cst_20 = arith.constant 9.99999974E-6 : f32
    %76 = vector.broadcast %cst_20 : f32 to vector<1x1xf32>
    %77 = arith.addf %75, %76 : vector<1x1xf32>
    %78 = math.rsqrt %77 : vector<1x1xf32>
    %79 = vector.broadcast %66 : vector<1x1xf32> to vector<4x64xf32>
    %80 = arith.subf %60, %79 : vector<4x64xf32>
    %81 = vector.broadcast %78 : vector<1x1xf32> to vector<4x64xf32>
    %82 = arith.mulf %80, %81 : vector<4x64xf32>
    %83 = vector.broadcast %3 : vector<4x1xf32> to vector<4x64xf32>
    %84 = arith.mulf %82, %83 : vector<4x64xf32>
    %85 = vector.broadcast %4 : vector<4x1xf32> to vector<4x64xf32>
    %86 = arith.addf %84, %85 : vector<4x64xf32>
    %cst_21 = arith.constant 5.000000e-01 : f32
    %87 = vector.broadcast %cst_21 : f32 to vector<4x64xf32>
    %88 = arith.mulf %87, %86 : vector<4x64xf32>
    %cst_22 = arith.constant 4.471500e-02 : f32
    %89 = vector.broadcast %cst_22 : f32 to vector<4x64xf32>
    %90 = arith.mulf %89, %86 : vector<4x64xf32>
    %91 = arith.mulf %90, %86 : vector<4x64xf32>
    %92 = arith.mulf %91, %86 : vector<4x64xf32>
    %93 = arith.addf %86, %92 : vector<4x64xf32>
    %cst_23 = arith.constant 0.797884583 : f32
    %94 = vector.broadcast %cst_23 : f32 to vector<4x64xf32>
    %95 = arith.mulf %94, %93 : vector<4x64xf32>
    %96 = math.tanh %95 : vector<4x64xf32>
    %cst_24 = arith.constant 1.000000e+00 : f32
    %97 = vector.broadcast %cst_24 : f32 to vector<4x64xf32>
    %98 = arith.addf %97, %96 : vector<4x64xf32>
    %99 = arith.mulf %88, %98 : vector<4x64xf32>
    %100 = vector.extract_strided_slice %99 {offsets = [0, 55], sizes = [4, 9], strides = [1, 1]} : vector<4x64xf32> to vector<4x9xf32>
    %101 = vector.extract_strided_slice %99 {offsets = [0, 0], sizes = [4, 55], strides = [1, 1]} : vector<4x64xf32> to vector<4x55xf32>
    %102 = tpu.concatenate %100, %101 in 1 : vector<4x9xf32>, vector<4x55xf32> -> vector<4x64xf32>
    %103 = vector.extract_strided_slice %2 {offsets = [0, 0], sizes = [1, 64], strides = [1, 1]} : vector<9x64xf32> to vector<1x64xf32>
    %104 = vector.broadcast %103 : vector<1x64xf32> to vector<4x64xf32>
    %105 = arith.mulf %102, %104 : vector<4x64xf32>
    %106 = vector.extract_strided_slice %99 {offsets = [0, 56], sizes = [4, 8], strides = [1, 1]} : vector<4x64xf32> to vector<4x8xf32>
    %107 = vector.extract_strided_slice %99 {offsets = [0, 0], sizes = [4, 56], strides = [1, 1]} : vector<4x64xf32> to vector<4x56xf32>
    %108 = tpu.concatenate %106, %107 in 1 : vector<4x8xf32>, vector<4x56xf32> -> vector<4x64xf32>
    %109 = vector.extract_strided_slice %2 {offsets = [1, 0], sizes = [1, 64], strides = [1, 1]} : vector<9x64xf32> to vector<1x64xf32>
    %110 = vector.broadcast %109 : vector<1x64xf32> to vector<4x64xf32>
    %111 = arith.mulf %108, %110 : vector<4x64xf32>
    %112 = vector.extract_strided_slice %99 {offsets = [0, 57], sizes = [4, 7], strides = [1, 1]} : vector<4x64xf32> to vector<4x7xf32>
    %113 = vector.extract_strided_slice %99 {offsets = [0, 0], sizes = [4, 57], strides = [1, 1]} : vector<4x64xf32> to vector<4x57xf32>
    %114 = tpu.concatenate %112, %113 in 1 : vector<4x7xf32>, vector<4x57xf32> -> vector<4x64xf32>
    %115 = vector.extract_strided_slice %2 {offsets = [2, 0], sizes = [1, 64], strides = [1, 1]} : vector<9x64xf32> to vector<1x64xf32>
    %116 = vector.broadcast %115 : vector<1x64xf32> to vector<4x64xf32>
    %117 = arith.mulf %114, %116 : vector<4x64xf32>
    %118 = vector.extract_strided_slice %99 {offsets = [0, 63], sizes = [4, 1], strides = [1, 1]} : vector<4x64xf32> to vector<4x1xf32>
    %119 = vector.extract_strided_slice %99 {offsets = [0, 0], sizes = [4, 63], strides = [1, 1]} : vector<4x64xf32> to vector<4x63xf32>
    %120 = tpu.concatenate %118, %119 in 1 : vector<4x1xf32>, vector<4x63xf32> -> vector<4x64xf32>
    %121 = vector.extract_strided_slice %2 {offsets = [3, 0], sizes = [1, 64], strides = [1, 1]} : vector<9x64xf32> to vector<1x64xf32>
    %122 = vector.broadcast %121 : vector<1x64xf32> to vector<4x64xf32>
    %123 = arith.mulf %120, %122 : vector<4x64xf32>
    %124 = vector.extract_strided_slice %2 {offsets = [4, 0], sizes = [1, 64], strides = [1, 1]} : vector<9x64xf32> to vector<1x64xf32>
    %125 = vector.broadcast %124 : vector<1x64xf32> to vector<4x64xf32>
    %126 = arith.mulf %99, %125 : vector<4x64xf32>
    %127 = vector.extract_strided_slice %99 {offsets = [0, 1], sizes = [4, 63], strides = [1, 1]} : vector<4x64xf32> to vector<4x63xf32>
    %128 = vector.extract_strided_slice %99 {offsets = [0, 0], sizes = [4, 1], strides = [1, 1]} : vector<4x64xf32> to vector<4x1xf32>
    %129 = tpu.concatenate %127, %128 in 1 : vector<4x63xf32>, vector<4x1xf32> -> vector<4x64xf32>
    %130 = vector.extract_strided_slice %2 {offsets = [5, 0], sizes = [1, 64], strides = [1, 1]} : vector<9x64xf32> to vector<1x64xf32>
    %131 = vector.broadcast %130 : vector<1x64xf32> to vector<4x64xf32>
    %132 = arith.mulf %129, %131 : vector<4x64xf32>
    %133 = vector.extract_strided_slice %99 {offsets = [0, 7], sizes = [4, 57], strides = [1, 1]} : vector<4x64xf32> to vector<4x57xf32>
    %134 = vector.extract_strided_slice %99 {offsets = [0, 0], sizes = [4, 7], strides = [1, 1]} : vector<4x64xf32> to vector<4x7xf32>
    %135 = tpu.concatenate %133, %134 in 1 : vector<4x57xf32>, vector<4x7xf32> -> vector<4x64xf32>
    %136 = vector.extract_strided_slice %2 {offsets = [6, 0], sizes = [1, 64], strides = [1, 1]} : vector<9x64xf32> to vector<1x64xf32>
    %137 = vector.broadcast %136 : vector<1x64xf32> to vector<4x64xf32>
    %138 = arith.mulf %135, %137 : vector<4x64xf32>
    %139 = vector.extract_strided_slice %99 {offsets = [0, 8], sizes = [4, 56], strides = [1, 1]} : vector<4x64xf32> to vector<4x56xf32>
    %140 = vector.extract_strided_slice %99 {offsets = [0, 0], sizes = [4, 8], strides = [1, 1]} : vector<4x64xf32> to vector<4x8xf32>
    %141 = tpu.concatenate %139, %140 in 1 : vector<4x56xf32>, vector<4x8xf32> -> vector<4x64xf32>
    %142 = vector.extract_strided_slice %2 {offsets = [7, 0], sizes = [1, 64], strides = [1, 1]} : vector<9x64xf32> to vector<1x64xf32>
    %143 = vector.broadcast %142 : vector<1x64xf32> to vector<4x64xf32>
    %144 = arith.mulf %141, %143 : vector<4x64xf32>
    %145 = vector.extract_strided_slice %99 {offsets = [0, 9], sizes = [4, 55], strides = [1, 1]} : vector<4x64xf32> to vector<4x55xf32>
    %146 = vector.extract_strided_slice %99 {offsets = [0, 0], sizes = [4, 9], strides = [1, 1]} : vector<4x64xf32> to vector<4x9xf32>
    %147 = tpu.concatenate %145, %146 in 1 : vector<4x55xf32>, vector<4x9xf32> -> vector<4x64xf32>
    %148 = vector.extract_strided_slice %2 {offsets = [8, 0], sizes = [1, 64], strides = [1, 1]} : vector<9x64xf32> to vector<1x64xf32>
    %149 = vector.broadcast %148 : vector<1x64xf32> to vector<4x64xf32>
    %150 = arith.mulf %147, %149 : vector<4x64xf32>
    %151 = tpu.concatenate %105, %111, %117, %123, %126, %132, %138, %144, %150 in 0 : vector<4x64xf32>, vector<4x64xf32>, vector<4x64xf32>, vector<4x64xf32>, vector<4x64xf32>, vector<4x64xf32>, vector<4x64xf32>, vector<4x64xf32>, vector<4x64xf32> -> vector<36x64xf32>
    %c0_25 = arith.constant 0 : index
    %c0_26 = arith.constant 0 : index
    %152 = vector.load %arg5[%c0_25, %c0_26] : memref<4x36xf32, #tpu.memory_space<vmem>>, vector<4x36xf32>
    %cst_27 = arith.constant dense<0.000000e+00> : vector<4x64xf32>
    %153 = tpu.matmul %152, %151, %cst_27 {dimension_numbers = #tpu.dot_dimension_numbers<[1], [0], [0], [1], [0, 0, 1, 1], [], []>} : vector<4x36xf32>, vector<36x64xf32>, vector<4x64xf32> -> vector<4x64xf32>
    %cst_28 = arith.constant dense<0.000000e+00> : vector<4xf32>
    %154 = vector.multi_reduction <add>, %153, %cst_28 [1] : vector<4x64xf32> to vector<4xf32>
    %155 = vector.shape_cast %154 : vector<4xf32> to vector<4x1xf32>
    %cst_29 = arith.constant dense<0.000000e+00> : vector<1xf32>
    %156 = vector.multi_reduction <add>, %155, %cst_29 [0] : vector<4x1xf32> to vector<1xf32>
    %157 = vector.shape_cast %156 : vector<1xf32> to vector<1x1xf32>
    %cst_30 = arith.constant 3.906250e-03 : f32
    %158 = vector.broadcast %cst_30 : f32 to vector<1x1xf32>
    %159 = arith.mulf %157, %158 : vector<1x1xf32>
    %160 = arith.mulf %153, %153 : vector<4x64xf32>
    %cst_31 = arith.constant dense<0.000000e+00> : vector<4xf32>
    %161 = vector.multi_reduction <add>, %160, %cst_31 [1] : vector<4x64xf32> to vector<4xf32>
    %162 = vector.shape_cast %161 : vector<4xf32> to vector<4x1xf32>
    %cst_32 = arith.constant dense<0.000000e+00> : vector<1xf32>
    %163 = vector.multi_reduction <add>, %162, %cst_32 [0] : vector<4x1xf32> to vector<1xf32>
    %164 = vector.shape_cast %163 : vector<1xf32> to vector<1x1xf32>
    %cst_33 = arith.constant 3.906250e-03 : f32
    %165 = vector.broadcast %cst_33 : f32 to vector<1x1xf32>
    %166 = arith.mulf %164, %165 : vector<1x1xf32>
    %167 = arith.mulf %159, %159 : vector<1x1xf32>
    %168 = arith.subf %166, %167 : vector<1x1xf32>
    %cst_34 = arith.constant 9.99999974E-6 : f32
    %169 = vector.broadcast %cst_34 : f32 to vector<1x1xf32>
    %170 = arith.addf %168, %169 : vector<1x1xf32>
    %171 = math.rsqrt %170 : vector<1x1xf32>
    %172 = vector.broadcast %159 : vector<1x1xf32> to vector<4x64xf32>
    %173 = arith.subf %153, %172 : vector<4x64xf32>
    %174 = vector.broadcast %171 : vector<1x1xf32> to vector<4x64xf32>
    %175 = arith.mulf %173, %174 : vector<4x64xf32>
    %176 = vector.broadcast %3 : vector<4x1xf32> to vector<4x64xf32>
    %177 = arith.mulf %175, %176 : vector<4x64xf32>
    %178 = vector.broadcast %4 : vector<4x1xf32> to vector<4x64xf32>
    %179 = arith.addf %177, %178 : vector<4x64xf32>
    %180 = arith.addf %179, %1 : vector<4x64xf32>
    %cst_35 = arith.constant 5.000000e-01 : f32
    %181 = vector.broadcast %cst_35 : f32 to vector<4x64xf32>
    %182 = arith.mulf %181, %180 : vector<4x64xf32>
    %cst_36 = arith.constant 4.471500e-02 : f32
    %183 = vector.broadcast %cst_36 : f32 to vector<4x64xf32>
    %184 = arith.mulf %183, %180 : vector<4x64xf32>
    %185 = arith.mulf %184, %180 : vector<4x64xf32>
    %186 = arith.mulf %185, %180 : vector<4x64xf32>
    %187 = arith.addf %180, %186 : vector<4x64xf32>
    %cst_37 = arith.constant 0.797884583 : f32
    %188 = vector.broadcast %cst_37 : f32 to vector<4x64xf32>
    %189 = arith.mulf %188, %187 : vector<4x64xf32>
    %190 = math.tanh %189 : vector<4x64xf32>
    %cst_38 = arith.constant 1.000000e+00 : f32
    %191 = vector.broadcast %cst_38 : f32 to vector<4x64xf32>
    %192 = arith.addf %191, %190 : vector<4x64xf32>
    %193 = arith.mulf %182, %192 : vector<4x64xf32>
    %194 = vector.extract_strided_slice %193 {offsets = [0, 55], sizes = [4, 9], strides = [1, 1]} : vector<4x64xf32> to vector<4x9xf32>
    %195 = vector.extract_strided_slice %193 {offsets = [0, 0], sizes = [4, 55], strides = [1, 1]} : vector<4x64xf32> to vector<4x55xf32>
    %196 = tpu.concatenate %194, %195 in 1 : vector<4x9xf32>, vector<4x55xf32> -> vector<4x64xf32>
    %197 = vector.extract_strided_slice %2 {offsets = [0, 0], sizes = [1, 64], strides = [1, 1]} : vector<9x64xf32> to vector<1x64xf32>
    %198 = vector.broadcast %197 : vector<1x64xf32> to vector<4x64xf32>
    %199 = arith.mulf %196, %198 : vector<4x64xf32>
    %200 = vector.extract_strided_slice %193 {offsets = [0, 56], sizes = [4, 8], strides = [1, 1]} : vector<4x64xf32> to vector<4x8xf32>
    %201 = vector.extract_strided_slice %193 {offsets = [0, 0], sizes = [4, 56], strides = [1, 1]} : vector<4x64xf32> to vector<4x56xf32>
    %202 = tpu.concatenate %200, %201 in 1 : vector<4x8xf32>, vector<4x56xf32> -> vector<4x64xf32>
    %203 = vector.extract_strided_slice %2 {offsets = [1, 0], sizes = [1, 64], strides = [1, 1]} : vector<9x64xf32> to vector<1x64xf32>
    %204 = vector.broadcast %203 : vector<1x64xf32> to vector<4x64xf32>
    %205 = arith.mulf %202, %204 : vector<4x64xf32>
    %206 = vector.extract_strided_slice %193 {offsets = [0, 57], sizes = [4, 7], strides = [1, 1]} : vector<4x64xf32> to vector<4x7xf32>
    %207 = vector.extract_strided_slice %193 {offsets = [0, 0], sizes = [4, 57], strides = [1, 1]} : vector<4x64xf32> to vector<4x57xf32>
    %208 = tpu.concatenate %206, %207 in 1 : vector<4x7xf32>, vector<4x57xf32> -> vector<4x64xf32>
    %209 = vector.extract_strided_slice %2 {offsets = [2, 0], sizes = [1, 64], strides = [1, 1]} : vector<9x64xf32> to vector<1x64xf32>
    %210 = vector.broadcast %209 : vector<1x64xf32> to vector<4x64xf32>
    %211 = arith.mulf %208, %210 : vector<4x64xf32>
    %212 = vector.extract_strided_slice %193 {offsets = [0, 63], sizes = [4, 1], strides = [1, 1]} : vector<4x64xf32> to vector<4x1xf32>
    %213 = vector.extract_strided_slice %193 {offsets = [0, 0], sizes = [4, 63], strides = [1, 1]} : vector<4x64xf32> to vector<4x63xf32>
    %214 = tpu.concatenate %212, %213 in 1 : vector<4x1xf32>, vector<4x63xf32> -> vector<4x64xf32>
    %215 = vector.extract_strided_slice %2 {offsets = [3, 0], sizes = [1, 64], strides = [1, 1]} : vector<9x64xf32> to vector<1x64xf32>
    %216 = vector.broadcast %215 : vector<1x64xf32> to vector<4x64xf32>
    %217 = arith.mulf %214, %216 : vector<4x64xf32>
    %218 = vector.extract_strided_slice %2 {offsets = [4, 0], sizes = [1, 64], strides = [1, 1]} : vector<9x64xf32> to vector<1x64xf32>
    %219 = vector.broadcast %218 : vector<1x64xf32> to vector<4x64xf32>
    %220 = arith.mulf %193, %219 : vector<4x64xf32>
    %221 = vector.extract_strided_slice %193 {offsets = [0, 1], sizes = [4, 63], strides = [1, 1]} : vector<4x64xf32> to vector<4x63xf32>
    %222 = vector.extract_strided_slice %193 {offsets = [0, 0], sizes = [4, 1], strides = [1, 1]} : vector<4x64xf32> to vector<4x1xf32>
    %223 = tpu.concatenate %221, %222 in 1 : vector<4x63xf32>, vector<4x1xf32> -> vector<4x64xf32>
    %224 = vector.extract_strided_slice %2 {offsets = [5, 0], sizes = [1, 64], strides = [1, 1]} : vector<9x64xf32> to vector<1x64xf32>
    %225 = vector.broadcast %224 : vector<1x64xf32> to vector<4x64xf32>
    %226 = arith.mulf %223, %225 : vector<4x64xf32>
    %227 = vector.extract_strided_slice %193 {offsets = [0, 7], sizes = [4, 57], strides = [1, 1]} : vector<4x64xf32> to vector<4x57xf32>
    %228 = vector.extract_strided_slice %193 {offsets = [0, 0], sizes = [4, 7], strides = [1, 1]} : vector<4x64xf32> to vector<4x7xf32>
    %229 = tpu.concatenate %227, %228 in 1 : vector<4x57xf32>, vector<4x7xf32> -> vector<4x64xf32>
    %230 = vector.extract_strided_slice %2 {offsets = [6, 0], sizes = [1, 64], strides = [1, 1]} : vector<9x64xf32> to vector<1x64xf32>
    %231 = vector.broadcast %230 : vector<1x64xf32> to vector<4x64xf32>
    %232 = arith.mulf %229, %231 : vector<4x64xf32>
    %233 = vector.extract_strided_slice %193 {offsets = [0, 8], sizes = [4, 56], strides = [1, 1]} : vector<4x64xf32> to vector<4x56xf32>
    %234 = vector.extract_strided_slice %193 {offsets = [0, 0], sizes = [4, 8], strides = [1, 1]} : vector<4x64xf32> to vector<4x8xf32>
    %235 = tpu.concatenate %233, %234 in 1 : vector<4x56xf32>, vector<4x8xf32> -> vector<4x64xf32>
    %236 = vector.extract_strided_slice %2 {offsets = [7, 0], sizes = [1, 64], strides = [1, 1]} : vector<9x64xf32> to vector<1x64xf32>
    %237 = vector.broadcast %236 : vector<1x64xf32> to vector<4x64xf32>
    %238 = arith.mulf %235, %237 : vector<4x64xf32>
    %239 = vector.extract_strided_slice %193 {offsets = [0, 9], sizes = [4, 55], strides = [1, 1]} : vector<4x64xf32> to vector<4x55xf32>
    %240 = vector.extract_strided_slice %193 {offsets = [0, 0], sizes = [4, 9], strides = [1, 1]} : vector<4x64xf32> to vector<4x9xf32>
    %241 = tpu.concatenate %239, %240 in 1 : vector<4x55xf32>, vector<4x9xf32> -> vector<4x64xf32>
    %242 = vector.extract_strided_slice %2 {offsets = [8, 0], sizes = [1, 64], strides = [1, 1]} : vector<9x64xf32> to vector<1x64xf32>
    %243 = vector.broadcast %242 : vector<1x64xf32> to vector<4x64xf32>
    %244 = arith.mulf %241, %243 : vector<4x64xf32>
    %245 = tpu.concatenate %199, %205, %211, %217, %220, %226, %232, %238, %244 in 0 : vector<4x64xf32>, vector<4x64xf32>, vector<4x64xf32>, vector<4x64xf32>, vector<4x64xf32>, vector<4x64xf32>, vector<4x64xf32>, vector<4x64xf32>, vector<4x64xf32> -> vector<36x64xf32>
    %c0_39 = arith.constant 0 : index
    %c0_40 = arith.constant 0 : index
    %246 = vector.load %arg8[%c0_39, %c0_40] : memref<8x36xf32, #tpu.memory_space<vmem>>, vector<8x36xf32>
    %cst_41 = arith.constant dense<0.000000e+00> : vector<8x64xf32>
    %247 = tpu.matmul %246, %245, %cst_41 {dimension_numbers = #tpu.dot_dimension_numbers<[1], [0], [0], [1], [0, 0, 1, 1], [], []>} : vector<8x36xf32>, vector<36x64xf32>, vector<8x64xf32> -> vector<8x64xf32>
    %cst_42 = arith.constant dense<0.000000e+00> : vector<8xf32>
    %248 = vector.multi_reduction <add>, %247, %cst_42 [1] : vector<8x64xf32> to vector<8xf32>
    %249 = vector.shape_cast %248 : vector<8xf32> to vector<8x1xf32>
    %cst_43 = arith.constant dense<0.000000e+00> : vector<1xf32>
    %250 = vector.multi_reduction <add>, %249, %cst_43 [0] : vector<8x1xf32> to vector<1xf32>
    %251 = vector.shape_cast %250 : vector<1xf32> to vector<1x1xf32>
    %cst_44 = arith.constant 0.001953125 : f32
    %252 = vector.broadcast %cst_44 : f32 to vector<1x1xf32>
    %253 = arith.mulf %251, %252 : vector<1x1xf32>
    %254 = arith.mulf %247, %247 : vector<8x64xf32>
    %cst_45 = arith.constant dense<0.000000e+00> : vector<8xf32>
    %255 = vector.multi_reduction <add>, %254, %cst_45 [1] : vector<8x64xf32> to vector<8xf32>
    %256 = vector.shape_cast %255 : vector<8xf32> to vector<8x1xf32>
    %cst_46 = arith.constant dense<0.000000e+00> : vector<1xf32>
    %257 = vector.multi_reduction <add>, %256, %cst_46 [0] : vector<8x1xf32> to vector<1xf32>
    %258 = vector.shape_cast %257 : vector<1xf32> to vector<1x1xf32>
    %cst_47 = arith.constant 0.001953125 : f32
    %259 = vector.broadcast %cst_47 : f32 to vector<1x1xf32>
    %260 = arith.mulf %258, %259 : vector<1x1xf32>
    %261 = arith.mulf %253, %253 : vector<1x1xf32>
    %262 = arith.subf %260, %261 : vector<1x1xf32>
    %cst_48 = arith.constant 9.99999974E-6 : f32
    %263 = vector.broadcast %cst_48 : f32 to vector<1x1xf32>
    %264 = arith.addf %262, %263 : vector<1x1xf32>
    %265 = math.rsqrt %264 : vector<1x1xf32>
    %266 = vector.broadcast %253 : vector<1x1xf32> to vector<8x64xf32>
    %267 = arith.subf %247, %266 : vector<8x64xf32>
    %268 = vector.broadcast %265 : vector<1x1xf32> to vector<8x64xf32>
    %269 = arith.mulf %267, %268 : vector<8x64xf32>
    %270 = vector.broadcast %5 : vector<8x1xf32> to vector<8x64xf32>
    %271 = arith.mulf %269, %270 : vector<8x64xf32>
    %272 = vector.broadcast %6 : vector<8x1xf32> to vector<8x64xf32>
    %273 = arith.addf %271, %272 : vector<8x64xf32>
    %cst_49 = arith.constant 5.000000e-01 : f32
    %274 = vector.broadcast %cst_49 : f32 to vector<8x64xf32>
    %275 = arith.mulf %274, %273 : vector<8x64xf32>
    %cst_50 = arith.constant 4.471500e-02 : f32
    %276 = vector.broadcast %cst_50 : f32 to vector<8x64xf32>
    %277 = arith.mulf %276, %273 : vector<8x64xf32>
    %278 = arith.mulf %277, %273 : vector<8x64xf32>
    %279 = arith.mulf %278, %273 : vector<8x64xf32>
    %280 = arith.addf %273, %279 : vector<8x64xf32>
    %cst_51 = arith.constant 0.797884583 : f32
    %281 = vector.broadcast %cst_51 : f32 to vector<8x64xf32>
    %282 = arith.mulf %281, %280 : vector<8x64xf32>
    %283 = math.tanh %282 : vector<8x64xf32>
    %cst_52 = arith.constant 1.000000e+00 : f32
    %284 = vector.broadcast %cst_52 : f32 to vector<8x64xf32>
    %285 = arith.addf %284, %283 : vector<8x64xf32>
    %286 = arith.mulf %275, %285 : vector<8x64xf32>
    %287 = vector.extract_strided_slice %286 {offsets = [0, 55], sizes = [8, 9], strides = [1, 1]} : vector<8x64xf32> to vector<8x9xf32>
    %288 = vector.extract_strided_slice %286 {offsets = [0, 0], sizes = [8, 55], strides = [1, 1]} : vector<8x64xf32> to vector<8x55xf32>
    %289 = tpu.concatenate %287, %288 in 1 : vector<8x9xf32>, vector<8x55xf32> -> vector<8x64xf32>
    %290 = vector.extract_strided_slice %2 {offsets = [0, 0], sizes = [1, 64], strides = [1, 1]} : vector<9x64xf32> to vector<1x64xf32>
    %291 = vector.broadcast %290 : vector<1x64xf32> to vector<8x64xf32>
    %292 = arith.mulf %289, %291 : vector<8x64xf32>
    %293 = vector.extract_strided_slice %286 {offsets = [0, 56], sizes = [8, 8], strides = [1, 1]} : vector<8x64xf32> to vector<8x8xf32>
    %294 = vector.extract_strided_slice %286 {offsets = [0, 0], sizes = [8, 56], strides = [1, 1]} : vector<8x64xf32> to vector<8x56xf32>
    %295 = tpu.concatenate %293, %294 in 1 : vector<8x8xf32>, vector<8x56xf32> -> vector<8x64xf32>
    %296 = vector.extract_strided_slice %2 {offsets = [1, 0], sizes = [1, 64], strides = [1, 1]} : vector<9x64xf32> to vector<1x64xf32>
    %297 = vector.broadcast %296 : vector<1x64xf32> to vector<8x64xf32>
    %298 = arith.mulf %295, %297 : vector<8x64xf32>
    %299 = vector.extract_strided_slice %286 {offsets = [0, 57], sizes = [8, 7], strides = [1, 1]} : vector<8x64xf32> to vector<8x7xf32>
    %300 = vector.extract_strided_slice %286 {offsets = [0, 0], sizes = [8, 57], strides = [1, 1]} : vector<8x64xf32> to vector<8x57xf32>
    %301 = tpu.concatenate %299, %300 in 1 : vector<8x7xf32>, vector<8x57xf32> -> vector<8x64xf32>
    %302 = vector.extract_strided_slice %2 {offsets = [2, 0], sizes = [1, 64], strides = [1, 1]} : vector<9x64xf32> to vector<1x64xf32>
    %303 = vector.broadcast %302 : vector<1x64xf32> to vector<8x64xf32>
    %304 = arith.mulf %301, %303 : vector<8x64xf32>
    %305 = vector.extract_strided_slice %286 {offsets = [0, 63], sizes = [8, 1], strides = [1, 1]} : vector<8x64xf32> to vector<8x1xf32>
    %306 = vector.extract_strided_slice %286 {offsets = [0, 0], sizes = [8, 63], strides = [1, 1]} : vector<8x64xf32> to vector<8x63xf32>
    %307 = tpu.concatenate %305, %306 in 1 : vector<8x1xf32>, vector<8x63xf32> -> vector<8x64xf32>
    %308 = vector.extract_strided_slice %2 {offsets = [3, 0], sizes = [1, 64], strides = [1, 1]} : vector<9x64xf32> to vector<1x64xf32>
    %309 = vector.broadcast %308 : vector<1x64xf32> to vector<8x64xf32>
    %310 = arith.mulf %307, %309 : vector<8x64xf32>
    %311 = vector.extract_strided_slice %2 {offsets = [4, 0], sizes = [1, 64], strides = [1, 1]} : vector<9x64xf32> to vector<1x64xf32>
    %312 = vector.broadcast %311 : vector<1x64xf32> to vector<8x64xf32>
    %313 = arith.mulf %286, %312 : vector<8x64xf32>
    %314 = vector.extract_strided_slice %286 {offsets = [0, 1], sizes = [8, 63], strides = [1, 1]} : vector<8x64xf32> to vector<8x63xf32>
    %315 = vector.extract_strided_slice %286 {offsets = [0, 0], sizes = [8, 1], strides = [1, 1]} : vector<8x64xf32> to vector<8x1xf32>
    %316 = tpu.concatenate %314, %315 in 1 : vector<8x63xf32>, vector<8x1xf32> -> vector<8x64xf32>
    %317 = vector.extract_strided_slice %2 {offsets = [5, 0], sizes = [1, 64], strides = [1, 1]} : vector<9x64xf32> to vector<1x64xf32>
    %318 = vector.broadcast %317 : vector<1x64xf32> to vector<8x64xf32>
    %319 = arith.mulf %316, %318 : vector<8x64xf32>
    %320 = vector.extract_strided_slice %286 {offsets = [0, 7], sizes = [8, 57], strides = [1, 1]} : vector<8x64xf32> to vector<8x57xf32>
    %321 = vector.extract_strided_slice %286 {offsets = [0, 0], sizes = [8, 7], strides = [1, 1]} : vector<8x64xf32> to vector<8x7xf32>
    %322 = tpu.concatenate %320, %321 in 1 : vector<8x57xf32>, vector<8x7xf32> -> vector<8x64xf32>
    %323 = vector.extract_strided_slice %2 {offsets = [6, 0], sizes = [1, 64], strides = [1, 1]} : vector<9x64xf32> to vector<1x64xf32>
    %324 = vector.broadcast %323 : vector<1x64xf32> to vector<8x64xf32>
    %325 = arith.mulf %322, %324 : vector<8x64xf32>
    %326 = vector.extract_strided_slice %286 {offsets = [0, 8], sizes = [8, 56], strides = [1, 1]} : vector<8x64xf32> to vector<8x56xf32>
    %327 = vector.extract_strided_slice %286 {offsets = [0, 0], sizes = [8, 8], strides = [1, 1]} : vector<8x64xf32> to vector<8x8xf32>
    %328 = tpu.concatenate %326, %327 in 1 : vector<8x56xf32>, vector<8x8xf32> -> vector<8x64xf32>
    %329 = vector.extract_strided_slice %2 {offsets = [7, 0], sizes = [1, 64], strides = [1, 1]} : vector<9x64xf32> to vector<1x64xf32>
    %330 = vector.broadcast %329 : vector<1x64xf32> to vector<8x64xf32>
    %331 = arith.mulf %328, %330 : vector<8x64xf32>
    %332 = vector.extract_strided_slice %286 {offsets = [0, 9], sizes = [8, 55], strides = [1, 1]} : vector<8x64xf32> to vector<8x55xf32>
    %333 = vector.extract_strided_slice %286 {offsets = [0, 0], sizes = [8, 9], strides = [1, 1]} : vector<8x64xf32> to vector<8x9xf32>
    %334 = tpu.concatenate %332, %333 in 1 : vector<8x55xf32>, vector<8x9xf32> -> vector<8x64xf32>
    %335 = vector.extract_strided_slice %2 {offsets = [8, 0], sizes = [1, 64], strides = [1, 1]} : vector<9x64xf32> to vector<1x64xf32>
    %336 = vector.broadcast %335 : vector<1x64xf32> to vector<8x64xf32>
    %337 = arith.mulf %334, %336 : vector<8x64xf32>
    %338 = tpu.concatenate %292, %298, %304, %310, %313, %319, %325, %331, %337 in 0 : vector<8x64xf32>, vector<8x64xf32>, vector<8x64xf32>, vector<8x64xf32>, vector<8x64xf32>, vector<8x64xf32>, vector<8x64xf32>, vector<8x64xf32>, vector<8x64xf32> -> vector<72x64xf32>
    %c0_53 = arith.constant 0 : index
    %c0_54 = arith.constant 0 : index
    %339 = vector.load %arg9[%c0_53, %c0_54] : memref<8x72xf32, #tpu.memory_space<vmem>>, vector<8x72xf32>
    %cst_55 = arith.constant dense<0.000000e+00> : vector<8x64xf32>
    %340 = tpu.matmul %339, %338, %cst_55 {dimension_numbers = #tpu.dot_dimension_numbers<[1], [0], [0], [1], [0, 0, 1, 1], [], []>} : vector<8x72xf32>, vector<72x64xf32>, vector<8x64xf32> -> vector<8x64xf32>
    %cst_56 = arith.constant dense<0.000000e+00> : vector<8xf32>
    %341 = vector.multi_reduction <add>, %340, %cst_56 [1] : vector<8x64xf32> to vector<8xf32>
    %342 = vector.shape_cast %341 : vector<8xf32> to vector<8x1xf32>
    %cst_57 = arith.constant dense<0.000000e+00> : vector<1xf32>
    %343 = vector.multi_reduction <add>, %342, %cst_57 [0] : vector<8x1xf32> to vector<1xf32>
    %344 = vector.shape_cast %343 : vector<1xf32> to vector<1x1xf32>
    %cst_58 = arith.constant 0.001953125 : f32
    %345 = vector.broadcast %cst_58 : f32 to vector<1x1xf32>
    %346 = arith.mulf %344, %345 : vector<1x1xf32>
    %347 = arith.mulf %340, %340 : vector<8x64xf32>
    %cst_59 = arith.constant dense<0.000000e+00> : vector<8xf32>
    %348 = vector.multi_reduction <add>, %347, %cst_59 [1] : vector<8x64xf32> to vector<8xf32>
    %349 = vector.shape_cast %348 : vector<8xf32> to vector<8x1xf32>
    %cst_60 = arith.constant dense<0.000000e+00> : vector<1xf32>
    %350 = vector.multi_reduction <add>, %349, %cst_60 [0] : vector<8x1xf32> to vector<1xf32>
    %351 = vector.shape_cast %350 : vector<1xf32> to vector<1x1xf32>
    %cst_61 = arith.constant 0.001953125 : f32
    %352 = vector.broadcast %cst_61 : f32 to vector<1x1xf32>
    %353 = arith.mulf %351, %352 : vector<1x1xf32>
    %354 = arith.mulf %346, %346 : vector<1x1xf32>
    %355 = arith.subf %353, %354 : vector<1x1xf32>
    %cst_62 = arith.constant 9.99999974E-6 : f32
    %356 = vector.broadcast %cst_62 : f32 to vector<1x1xf32>
    %357 = arith.addf %355, %356 : vector<1x1xf32>
    %358 = math.rsqrt %357 : vector<1x1xf32>
    %359 = vector.broadcast %346 : vector<1x1xf32> to vector<8x64xf32>
    %360 = arith.subf %340, %359 : vector<8x64xf32>
    %361 = vector.broadcast %358 : vector<1x1xf32> to vector<8x64xf32>
    %362 = arith.mulf %360, %361 : vector<8x64xf32>
    %363 = vector.broadcast %5 : vector<8x1xf32> to vector<8x64xf32>
    %364 = arith.mulf %362, %363 : vector<8x64xf32>
    %365 = vector.broadcast %6 : vector<8x1xf32> to vector<8x64xf32>
    %366 = arith.addf %364, %365 : vector<8x64xf32>
    %cst_63 = arith.constant 5.000000e-01 : f32
    %367 = vector.broadcast %cst_63 : f32 to vector<8x64xf32>
    %368 = arith.mulf %367, %366 : vector<8x64xf32>
    %cst_64 = arith.constant 4.471500e-02 : f32
    %369 = vector.broadcast %cst_64 : f32 to vector<8x64xf32>
    %370 = arith.mulf %369, %366 : vector<8x64xf32>
    %371 = arith.mulf %370, %366 : vector<8x64xf32>
    %372 = arith.mulf %371, %366 : vector<8x64xf32>
    %373 = arith.addf %366, %372 : vector<8x64xf32>
    %cst_65 = arith.constant 0.797884583 : f32
    %374 = vector.broadcast %cst_65 : f32 to vector<8x64xf32>
    %375 = arith.mulf %374, %373 : vector<8x64xf32>
    %376 = math.tanh %375 : vector<8x64xf32>
    %cst_66 = arith.constant 1.000000e+00 : f32
    %377 = vector.broadcast %cst_66 : f32 to vector<8x64xf32>
    %378 = arith.addf %377, %376 : vector<8x64xf32>
    %379 = arith.mulf %368, %378 : vector<8x64xf32>
    %c0_67 = arith.constant 0 : index
    %c0_68 = arith.constant 0 : index
    %380 = vector.load %arg3[%c0_67, %c0_68] : memref<32x2xf32, #tpu.memory_space<vmem>>, vector<32x2xf32>
    %cst_69 = arith.constant 0.000000e+00 : f32
    %381 = vector.broadcast %cst_69 : f32 to vector<32x2xf32>
    %382 = arith.subf %381, %380 : vector<32x2xf32>
    %383 = math.exp %382 : vector<32x2xf32>
    %cst_70 = arith.constant 1.000000e+00 : f32
    %384 = vector.broadcast %cst_70 : f32 to vector<32x2xf32>
    %385 = arith.addf %384, %383 : vector<32x2xf32>
    %cst_71 = arith.constant 1.000000e+00 : f32
    %386 = vector.broadcast %cst_71 : f32 to vector<32x2xf32>
    %387 = arith.divf %386, %385 : vector<32x2xf32>
    %388 = arith.mulf %380, %387 : vector<32x2xf32>
    %c0_72 = arith.constant 0 : index
    %c0_73 = arith.constant 0 : index
    %389 = vector.load %arg12[%c0_72, %c0_73] : memref<8x32xf32, #tpu.memory_space<vmem>>, vector<8x32xf32>
    %cst_74 = arith.constant dense<0.000000e+00> : vector<8x2xf32>
    %390 = tpu.matmul %389, %388, %cst_74 {dimension_numbers = #tpu.dot_dimension_numbers<[1], [0], [0], [1], [0, 0, 1, 1], [], []>} : vector<8x32xf32>, vector<32x2xf32>, vector<8x2xf32> -> vector<8x2xf32>
    %c0_75 = arith.constant 0 : index
    %c0_76 = arith.constant 0 : index
    %391 = vector.load %arg13[%c0_75, %c0_76] : memref<8x1xf32, #tpu.memory_space<vmem>>, vector<8x1xf32>
    %392 = vector.broadcast %391 : vector<8x1xf32> to vector<8x2xf32>
    %393 = arith.addf %390, %392 : vector<8x2xf32>
    %394 = tpu.iota {dimensions = array<i32: 1>} : vector<1x2xi32>
    %395 = vector.broadcast %arg0 : i32 to vector<1x2xi32>
    %396 = arith.cmpi eq, %394, %395 : vector<1x2xi32>
    %397 = arith.extui %396 : vector<1x2xi1> to vector<1x2xi32>
    %398 = arith.sitofp %397 : vector<1x2xi32> to vector<1x2xf32>
    %399 = vector.broadcast %398 : vector<1x2xf32> to vector<8x2xf32>
    %400 = arith.mulf %393, %399 : vector<8x2xf32>
    %cst_77 = arith.constant dense<0.000000e+00> : vector<8xf32>
    %401 = vector.multi_reduction <add>, %400, %cst_77 [1] : vector<8x2xf32> to vector<8xf32>
    %402 = vector.shape_cast %401 : vector<8xf32> to vector<8x1xf32>
    %403 = vector.broadcast %402 : vector<8x1xf32> to vector<8x64xf32>
    %404 = arith.addf %379, %403 : vector<8x64xf32>
    %c0_78 = arith.constant 0 : index
    %c0_79 = arith.constant 0 : index
    %c0_80 = arith.constant 0 : index
    %405 = vector.load %arg14[%c0_78, %c0_79, %c0_80] : memref<1x8x64xf32, #tpu.memory_space<vmem>>, vector<1x8x64xf32>
    %406 = vector.shape_cast %405 : vector<1x8x64xf32> to vector<8x64xf32>
    %407 = vector.shape_cast %404 : vector<8x64xf32> to vector<1x8x64xf32>
    tpu.vector_store %arg14[%c0_78, %c0_79, %c0_80], %407 {strides = array<i32>} : memref<1x8x64xf32, #tpu.memory_space<vmem>>, vector<1x8x64xf32>,
    return
  }
  func.func @transform_0(%arg0: i32) -> (i32, i32, i32) {
    %c0_i32 = arith.constant 0 : i32
    %c0_i32_0 = arith.constant 0 : i32
    %c0_i32_1 = arith.constant 0 : i32
    return %arg0, %c0_i32, %c0_i32_0 : i32, i32, i32
  }
  func.func @transform_1(%arg0: i32) -> (i32, i32) {
    %c0_i32 = arith.constant 0 : i32
    %c0_i32_0 = arith.constant 0 : i32
    %c0_i32_1 = arith.constant 0 : i32
    return %c0_i32, %c0_i32_0 : i32, i32
  }
  func.func @transform_2(%arg0: i32) -> (i32, i32) {
    %c0_i32 = arith.constant 0 : i32
    %c0_i32_0 = arith.constant 0 : i32
    %c0_i32_1 = arith.constant 0 : i32
    return %c0_i32, %c0_i32_0 : i32, i32
  }
  func.func @transform_3(%arg0: i32) -> (i32, i32) {
    %c0_i32 = arith.constant 0 : i32
    %c0_i32_0 = arith.constant 0 : i32
    %c0_i32_1 = arith.constant 0 : i32
    return %c0_i32, %c0_i32_0 : i32, i32
  }
  func.func @transform_4(%arg0: i32) -> (i32, i32) {
    %c0_i32 = arith.constant 0 : i32
    %c0_i32_0 = arith.constant 0 : i32
    %c0_i32_1 = arith.constant 0 : i32
    return %c0_i32, %c0_i32_0 : i32, i32
  }
  func.func @transform_5(%arg0: i32) -> (i32, i32) {
    %c0_i32 = arith.constant 0 : i32
    %c0_i32_0 = arith.constant 0 : i32
    %c0_i32_1 = arith.constant 0 : i32
    return %c0_i32, %c0_i32_0 : i32, i32
  }
  func.func @transform_6(%arg0: i32) -> (i32, i32) {
    %c0_i32 = arith.constant 0 : i32
    %c0_i32_0 = arith.constant 0 : i32
    %c0_i32_1 = arith.constant 0 : i32
    return %c0_i32, %c0_i32_0 : i32, i32
  }
  func.func @transform_7(%arg0: i32) -> (i32, i32) {
    %c0_i32 = arith.constant 0 : i32
    %c0_i32_0 = arith.constant 0 : i32
    %c0_i32_1 = arith.constant 0 : i32
    return %c0_i32, %c0_i32_0 : i32, i32
  }
  func.func @transform_8(%arg0: i32) -> (i32, i32) {
    %c0_i32 = arith.constant 0 : i32
    %c0_i32_0 = arith.constant 0 : i32
    %c0_i32_1 = arith.constant 0 : i32
    return %c0_i32, %c0_i32_0 : i32, i32
  }
  func.func @transform_9(%arg0: i32) -> (i32, i32) {
    %c0_i32 = arith.constant 0 : i32
    %c0_i32_0 = arith.constant 0 : i32
    %c0_i32_1 = arith.constant 0 : i32
    return %c0_i32, %c0_i32_0 : i32, i32
  }
  func.func @transform_10(%arg0: i32) -> (i32, i32) {
    %c0_i32 = arith.constant 0 : i32
    %c0_i32_0 = arith.constant 0 : i32
    %c0_i32_1 = arith.constant 0 : i32
    return %c0_i32, %c0_i32_0 : i32, i32
  }
  func.func @transform_11(%arg0: i32) -> (i32, i32) {
    %c0_i32 = arith.constant 0 : i32
    %c0_i32_0 = arith.constant 0 : i32
    %c0_i32_1 = arith.constant 0 : i32
    return %c0_i32, %c0_i32_0 : i32, i32
  }
  func.func @transform_12(%arg0: i32) -> (i32, i32) {
    %c0_i32 = arith.constant 0 : i32
    %c0_i32_0 = arith.constant 0 : i32
    %c0_i32_1 = arith.constant 0 : i32
    return %c0_i32, %c0_i32_0 : i32, i32
  }
  func.func @transform_13(%arg0: i32) -> (i32, i32, i32) {
    %c0_i32 = arith.constant 0 : i32
    %c0_i32_0 = arith.constant 0 : i32
    %c0_i32_1 = arith.constant 0 : i32
    return %arg0, %c0_i32, %c0_i32_0 : i32, i32, i32
  }
}

</mosaic_0001>

<llo_original>
// kernel: tpu_custom_call.1
$region0: #{tpu_custom_call.1}
  #allocation0 [shape = 'u32[]', space=smem, size = 0x4, offset = 0x4, fixed_abs, tag = 'smem constant byte address 0x4 - core index']
  #allocation1 [shape = 'u32[144,128]{1,0:T(1,128)}', space=vmem, size = 0x12000, scoped, tag = 'internal scratch']
  %s0 = inlined_call_operand.vmem [shape: f32[2,4,64], index: 0, kind: input, shape index: {}]
  %s1 = inlined_call_operand.vmem [shape: f32[9,64], index: 1, kind: input, shape index: {}]
  %s2 = inlined_call_operand.vmem [shape: f32[32,2], index: 2, kind: input, shape index: {}]
  %s3 = inlined_call_operand.vmem [shape: f32[4,36], index: 3, kind: input, shape index: {}]
  %s4 = inlined_call_operand.vmem [shape: f32[4,36], index: 4, kind: input, shape index: {}]
  %s5 = inlined_call_operand.vmem [shape: f32[4,1], index: 5, kind: input, shape index: {}]
  %s6 = inlined_call_operand.vmem [shape: f32[4,1], index: 6, kind: input, shape index: {}]
  %s7 = inlined_call_operand.vmem [shape: f32[8,36], index: 7, kind: input, shape index: {}]
  %s8 = inlined_call_operand.vmem [shape: f32[8,72], index: 8, kind: input, shape index: {}]
  %s9 = inlined_call_operand.vmem [shape: f32[8,1], index: 9, kind: input, shape index: {}]
  %s10 = inlined_call_operand.vmem [shape: f32[8,1], index: 10, kind: input, shape index: {}]
  %s11 = inlined_call_operand.vmem [shape: f32[8,32], index: 11, kind: input, shape index: {}]
  %s12 = inlined_call_operand.vmem [shape: f32[8,1], index: 12, kind: input, shape index: {}]
  %s13 = inlined_call_operand.hbm [shape: f32[2,8,64], index: 13, kind: output, shape index: {}]
  %s14 = sld [smem:[#allocation0]]
  $region85: #{tpu_custom_call.1} parent=0
    _
  %s16 = ssub.s32 1, %s14
  %s17 = scalar_select 0, %s16, %s14
  $region1: #{tpu_custom_call.1} parent=0
    #allocation2 [shape = 'u8[8192]{0}', space=vmem, size = 0x2000, scoped, tag = 'output window, operand 0']
    #allocation3 [shape = 's32[2]{0}', space=sflag, size = 0x8, scoped, tag = 'scoped memory for tpu_custom_call.1']
    %18 = vsyncpa [#allocation3], 0
    %s19 = scalar_lea.sflag [#allocation3], 1
    %20 = vsyncpa %s19, 0
    loop: start=0, step=1, limit=4
    $region2: #{tpu_custom_call.1} parent=1 // loop_pre_header
      _
    $region3: #{tpu_custom_call.1} parent=1 // loop_header
      %s22 = sphi 0, %s26
      %p23 = scmp.ge.s32.totalorder %s22, 4
      %s32 = sphi 0, %s34
      %s35 = sphi 0, %s32
      %s36 = sphi 0, %s35
      %s52 = sphi 0, %s36
      %s56 = sphi 0, %s56
      %s58 = sphi 0, %s56
      %s59 = sphi 0, %s58
      %s73 = sphi 0, %s59
      %s77 = sphi 0, %s77
      %s79 = sphi 0, %s77
      %s80 = sphi 0, %s79
      %s94 = sphi 0, %s80
      %s98 = sphi 0, %s98
      %s100 = sphi 0, %s98
      %s101 = sphi 0, %s100
      %s115 = sphi 0, %s101
      %s119 = sphi 0, %s119
      %s121 = sphi 0, %s119
      %s122 = sphi 0, %s121
      %s136 = sphi 0, %s122
      %s140 = sphi 0, %s140
      %s142 = sphi 0, %s140
      %s143 = sphi 0, %s142
      %s157 = sphi 0, %s143
      %s161 = sphi 0, %s161
      %s163 = sphi 0, %s161
      %s164 = sphi 0, %s163
      %s178 = sphi 0, %s164
      %s182 = sphi 0, %s182
      %s184 = sphi 0, %s182
      %s185 = sphi 0, %s184
      %s199 = sphi 0, %s185
      %s203 = sphi 0, %s203
      %s205 = sphi 0, %s203
      %s206 = sphi 0, %s205
      %s220 = sphi 0, %s206
      %s224 = sphi 0, %s224
      %s226 = sphi 0, %s224
      %s227 = sphi 0, %s226
      %s241 = sphi 0, %s227
      %s245 = sphi 0, %s245
      %s247 = sphi 0, %s245
      %s248 = sphi 0, %s247
      %s262 = sphi 0, %s248
      %s266 = sphi 0, %s266
      %s268 = sphi 0, %s266
      %s269 = sphi 0, %s268
      %s283 = sphi 0, %s269
      %s287 = sphi 0, %s287
      %s289 = sphi 0, %s287
      %s290 = sphi 0, %s289
      %s304 = sphi 0, %s290
      %s310 = sphi 0, %s312
      %s313 = sphi 0, %s310
      %s314 = sphi 0, %s313
      %s330 = sphi 0, %s314
    $region4: #{tpu_custom_call.1} parent=1 // loop_header_branch
      %25 = sbr.rel (%p23) target = $region8
    $region5: #{tpu_custom_call.1} parent=1 // loop_body
      %s27 = ssub.s32 %s22, 1
      %s28 = ssub.s32 %s22, 2
      %s29 = sadd.s32 %s22, 1
      %s30 = ssub.s32 %s22, %s29
      %p31 = scmp.eq.s32.totalorder %s30, 0
      %s33 = sadd.s32 %s32, 1
      %s34 = scalar_select %p31, %s32, %s33
      %p37 = pneg %p31
      %p38 = scmp.eq.s32.totalorder %s22, 1
      %p39 = por %p37, %p38
      %p40 = scmp.ne.s32.totalorder %s32, %s35
      %p41 = scmp.eq.s32.totalorder %s22, 0
      %p42 = por %p40, %p41
      %p43 = scmp.ne.s32.totalorder %s32, %s35
      %p44 = scmp.eq.s32.totalorder %s27, 1
      %p45 = por %p43, %p44
      %p46 = scmp.ne.s32.totalorder %s35, %s36
      %p47 = scmp.eq.s32.totalorder %s27, 0
      %p48 = por %p46, %p47
      %p49 = scmp.ne.s32.totalorder %s35, %s36
      %p50 = scmp.eq.s32.totalorder %s28, 1
      %p51 = por %p49, %p50
      %p53 = scmp.ne.s32.totalorder %s36, %s52
      %p54 = scmp.eq.s32.totalorder %s28, 0
      %p55 = por %p53, %p54
      %s57 = sadd.s32 %s56, 1
      %p60 = scmp.eq.s32.totalorder %s22, 1
      %p61 = scmp.ne.s32.totalorder %s56, %s58
      %p62 = scmp.eq.s32.totalorder %s22, 0
      %p63 = por %p61, %p62
      %p64 = scmp.ne.s32.totalorder %s56, %s58
      %p65 = scmp.eq.s32.totalorder %s27, 1
      %p66 = por %p64, %p65
      %p67 = scmp.ne.s32.totalorder %s58, %s59
      %p68 = scmp.eq.s32.totalorder %s27, 0
      %p69 = por %p67, %p68
      %p70 = scmp.ne.s32.totalorder %s58, %s59
      %p71 = scmp.eq.s32.totalorder %s28, 1
      %p72 = por %p70, %p71
      %p74 = scmp.ne.s32.totalorder %s59, %s73
      %p75 = scmp.eq.s32.totalorder %s28, 0
      %p76 = por %p74, %p75
      %s78 = sadd.s32 %s77, 1
      %p81 = scmp.eq.s32.totalorder %s22, 1
      %p82 = scmp.ne.s32.totalorder %s77, %s79
      %p83 = scmp.eq.s32.totalorder %s22, 0
      %p84 = por %p82, %p83
      %p85 = scmp.ne.s32.totalorder %s77, %s79
      %p86 = scmp.eq.s32.totalorder %s27, 1
      %p87 = por %p85, %p86
      %p88 = scmp.ne.s32.totalorder %s79, %s80
      %p89 = scmp.eq.s32.totalorder %s27, 0
      %p90 = por %p88, %p89
      %p91 = scmp.ne.s32.totalorder %s79, %s80
      %p92 = scmp.eq.s32.totalorder %s28, 1
      %p93 = por %p91, %p92
      %p95 = scmp.ne.s32.totalorder %s80, %s94
      %p96 = scmp.eq.s32.totalorder %s28, 0
      %p97 = por %p95, %p96
      %s99 = sadd.s32 %s98, 1
      %p102 = scmp.eq.s32.totalorder %s22, 1
      %p103 = scmp.ne.s32.totalorder %s98, %s100
      %p104 = scmp.eq.s32.totalorder %s22, 0
      %p105 = por %p103, %p104
      %p106 = scmp.ne.s32.totalorder %s98, %s100
      %p107 = scmp.eq.s32.totalorder %s27, 1
      %p108 = por %p106, %p107
      %p109 = scmp.ne.s32.totalorder %s100, %s101
      %p110 = scmp.eq.s32.totalorder %s27, 0
      %p111 = por %p109, %p110
      %p112 = scmp.ne.s32.totalorder %s100, %s101
      %p113 = scmp.eq.s32.totalorder %s28, 1
      %p114 = por %p112, %p113
      %p116 = scmp.ne.s32.totalorder %s101, %s115
      %p117 = scmp.eq.s32.totalorder %s28, 0
      %p118 = por %p116, %p117
      %s120 = sadd.s32 %s119, 1
      %p123 = scmp.eq.s32.totalorder %s22, 1
      %p124 = scmp.ne.s32.totalorder %s119, %s121
      %p125 = scmp.eq.s32.totalorder %s22, 0
      %p126 = por %p124, %p125
      %p127 = scmp.ne.s32.totalorder %s119, %s121
      %p128 = scmp.eq.s32.totalorder %s27, 1
      %p129 = por %p127, %p128
      %p130 = scmp.ne.s32.totalorder %s121, %s122
      %p131 = scmp.eq.s32.totalorder %s27, 0
      %p132 = por %p130, %p131
      %p133 = scmp.ne.s32.totalorder %s121, %s122
      %p134 = scmp.eq.s32.totalorder %s28, 1
      %p135 = por %p133, %p134
      %p137 = scmp.ne.s32.totalorder %s122, %s136
      %p138 = scmp.eq.s32.totalorder %s28, 0
      %p139 = por %p137, %p138
      %s141 = sadd.s32 %s140, 1
      %p144 = scmp.eq.s32.totalorder %s22, 1
      %p145 = scmp.ne.s32.totalorder %s140, %s142
      %p146 = scmp.eq.s32.totalorder %s22, 0
      %p147 = por %p145, %p146
      %p148 = scmp.ne.s32.totalorder %s140, %s142
      %p149 = scmp.eq.s32.totalorder %s27, 1
      %p150 = por %p148, %p149
      %p151 = scmp.ne.s32.totalorder %s142, %s143
      %p152 = scmp.eq.s32.totalorder %s27, 0
      %p153 = por %p151, %p152
      %p154 = scmp.ne.s32.totalorder %s142, %s143
      %p155 = scmp.eq.s32.totalorder %s28, 1
      %p156 = por %p154, %p155
      %p158 = scmp.ne.s32.totalorder %s143, %s157
      %p159 = scmp.eq.s32.totalorder %s28, 0
      %p160 = por %p158, %p159
      %s162 = sadd.s32 %s161, 1
      %p165 = scmp.eq.s32.totalorder %s22, 1
      %p166 = scmp.ne.s32.totalorder %s161, %s163
      %p167 = scmp.eq.s32.totalorder %s22, 0
      %p168 = por %p166, %p167
      %p169 = scmp.ne.s32.totalorder %s161, %s163
      %p170 = scmp.eq.s32.totalorder %s27, 1
      %p171 = por %p169, %p170
      %p172 = scmp.ne.s32.totalorder %s163, %s164
      %p173 = scmp.eq.s32.totalorder %s27, 0
      %p174 = por %p172, %p173
      %p175 = scmp.ne.s32.totalorder %s163, %s164
      %p176 = scmp.eq.s32.totalorder %s28, 1
      %p177 = por %p175, %p176
      %p179 = scmp.ne.s32.totalorder %s164, %s178
      %p180 = scmp.eq.s32.totalorder %s28, 0
      %p181 = por %p179, %p180
      %s183 = sadd.s32 %s182, 1
      %p186 = scmp.eq.s32.totalorder %s22, 1
      %p187 = scmp.ne.s32.totalorder %s182, %s184
      %p188 = scmp.eq.s32.totalorder %s22, 0
      %p189 = por %p187, %p188
      %p190 = scmp.ne.s32.totalorder %s182, %s184
      %p191 = scmp.eq.s32.totalorder %s27, 1
      %p192 = por %p190, %p191
      %p193 = scmp.ne.s32.totalorder %s184, %s185
      %p194 = scmp.eq.s32.totalorder %s27, 0
      %p195 = por %p193, %p194
      %p196 = scmp.ne.s32.totalorder %s184, %s185
      %p197 = scmp.eq.s32.totalorder %s28, 1
      %p198 = por %p196, %p197
      %p200 = scmp.ne.s32.totalorder %s185, %s199
      %p201 = scmp.eq.s32.totalorder %s28, 0
      %p202 = por %p200, %p201
      %s204 = sadd.s32 %s203, 1
      %p207 = scmp.eq.s32.totalorder %s22, 1
      %p208 = scmp.ne.s32.totalorder %s203, %s205
      %p209 = scmp.eq.s32.totalorder %s22, 0
      %p210 = por %p208, %p209
      %p211 = scmp.ne.s32.totalorder %s203, %s205
      %p212 = scmp.eq.s32.totalorder %s27, 1
      %p213 = por %p211, %p212
      %p214 = scmp.ne.s32.totalorder %s205, %s206
      %p215 = scmp.eq.s32.totalorder %s27, 0
      %p216 = por %p214, %p215
      %p217 = scmp.ne.s32.totalorder %s205, %s206
      %p218 = scmp.eq.s32.totalorder %s28, 1
      %p219 = por %p217, %p218
      %p221 = scmp.ne.s32.totalorder %s206, %s220
      %p222 = scmp.eq.s32.totalorder %s28, 0
      %p223 = por %p221, %p222
      %s225 = sadd.s32 %s224, 1
      %p228 = scmp.eq.s32.totalorder %s22, 1
      %p229 = scmp.ne.s32.totalorder %s224, %s226
      %p230 = scmp.eq.s32.totalorder %s22, 0
      %p231 = por %p229, %p230
      %p232 = scmp.ne.s32.totalorder %s224, %s226
      %p233 = scmp.eq.s32.totalorder %s27, 1
      %p234 = por %p232, %p233
      %p235 = scmp.ne.s32.totalorder %s226, %s227
      %p236 = scmp.eq.s32.totalorder %s27, 0
      %p237 = por %p235, %p236
      %p238 = scmp.ne.s32.totalorder %s226, %s227
      %p239 = scmp.eq.s32.totalorder %s28, 1
      %p240 = por %p238, %p239
      %p242 = scmp.ne.s32.totalorder %s227, %s241
      %p243 = scmp.eq.s32.totalorder %s28, 0
      %p244 = por %p242, %p243
      %s246 = sadd.s32 %s245, 1
      %p249 = scmp.eq.s32.totalorder %s22, 1
      %p250 = scmp.ne.s32.totalorder %s245, %s247
      %p251 = scmp.eq.s32.totalorder %s22, 0
      %p252 = por %p250, %p251
      %p253 = scmp.ne.s32.totalorder %s245, %s247
      %p254 = scmp.eq.s32.totalorder %s27, 1
      %p255 = por %p253, %p254
      %p256 = scmp.ne.s32.totalorder %s247, %s248
      %p257 = scmp.eq.s32.totalorder %s27, 0
      %p258 = por %p256, %p257
      %p259 = scmp.ne.s32.totalorder %s247, %s248
      %p260 = scmp.eq.s32.totalorder %s28, 1
      %p261 = por %p259, %p260
      %p263 = scmp.ne.s32.totalorder %s248, %s262
      %p264 = scmp.eq.s32.totalorder %s28, 0
      %p265 = por %p263, %p264
      %s267 = sadd.s32 %s266, 1
      %p270 = scmp.eq.s32.totalorder %s22, 1
      %p271 = scmp.ne.s32.totalorder %s266, %s268
      %p272 = scmp.eq.s32.totalorder %s22, 0
      %p273 = por %p271, %p272
      %p274 = scmp.ne.s32.totalorder %s266, %s268
      %p275 = scmp.eq.s32.totalorder %s27, 1
      %p276 = por %p274, %p275
      %p277 = scmp.ne.s32.totalorder %s268, %s269
      %p278 = scmp.eq.s32.totalorder %s27, 0
      %p279 = por %p277, %p278
      %p280 = scmp.ne.s32.totalorder %s268, %s269
      %p281 = scmp.eq.s32.totalorder %s28, 1
      %p282 = por %p280, %p281
      %p284 = scmp.ne.s32.totalorder %s269, %s283
      %p285 = scmp.eq.s32.totalorder %s28, 0
      %p286 = por %p284, %p285
      %s288 = sadd.s32 %s287, 1
      %p291 = scmp.eq.s32.totalorder %s22, 1
      %p292 = scmp.ne.s32.totalorder %s287, %s289
      %p293 = scmp.eq.s32.totalorder %s22, 0
      %p294 = por %p292, %p293
      %p295 = scmp.ne.s32.totalorder %s287, %s289
      %p296 = scmp.eq.s32.totalorder %s27, 1
      %p297 = por %p295, %p296
      %p298 = scmp.ne.s32.totalorder %s289, %s290
      %p299 = scmp.eq.s32.totalorder %s27, 0
      %p300 = por %p298, %p299
      %p301 = scmp.ne.s32.totalorder %s289, %s290
      %p302 = scmp.eq.s32.totalorder %s28, 1
      %p303 = por %p301, %p302
      %p305 = scmp.ne.s32.totalorder %s290, %s304
      %p306 = scmp.eq.s32.totalorder %s28, 0
      %p307 = por %p305, %p306
      %s308 = ssub.s32 %s22, %s29
      %p309 = scmp.eq.s32.totalorder %s308, 0
      %s311 = sadd.s32 %s310, 1
      %s312 = scalar_select %p309, %s310, %s311
      %p315 = pneg %p309
      %p316 = scmp.eq.s32.totalorder %s22, 1
      %p317 = por %p315, %p316
      %p318 = scmp.ne.s32.totalorder %s310, %s313
      %p319 = scmp.eq.s32.totalorder %s22, 0
      %p320 = por %p318, %p319
      %p321 = scmp.ne.s32.totalorder %s310, %s313
      %p322 = scmp.eq.s32.totalorder %s27, 1
      %p323 = por %p321, %p322
      %p324 = scmp.ne.s32.totalorder %s313, %s314
      %p325 = scmp.eq.s32.totalorder %s27, 0
      %p326 = por %p324, %p325
      %p327 = scmp.ne.s32.totalorder %s313, %s314
      %p328 = scmp.eq.s32.totalorder %s28, 1
      %p329 = por %p327, %p328
      %p331 = scmp.ne.s32.totalorder %s314, %s330
      %p332 = scmp.eq.s32.totalorder %s28, 0
      %p333 = por %p331, %p332
      %p334 = scmp.le.s32.totalorder 1, %s22
      %p335 = scmp.lt.s32.totalorder %s22, 3
      %p336 = pnand %p334, %p335
      %p337 = pneg %p336
      // Predicated region
      $region9: #{tpu_custom_call.1} parent=5 // pred_check
        _
      $region10: #{tpu_custom_call.1} parent=5 // pred_check_branch
        %339 = sbr.rel (%p336) target = $region12
      $region11: #{tpu_custom_call.1} parent=5 // pred_region
        %s340 = ssub.s32 %s22, 1
        // Predicated region
        $region13: #{tpu_custom_call.1} parent=11 // pred_check
          %p341 = pneg %p69
        $region14: #{tpu_custom_call.1} parent=11 // pred_check_branch
          %343 = sbr.rel (%p341) target = $region16
        $region15: #{tpu_custom_call.1} parent=11 // pred_region
          _
        $region16: #{tpu_custom_call.1} parent=11 // pred_fallthru
          _
        // Predicated region
        $region17: #{tpu_custom_call.1} parent=11 // pred_check
          %p344 = pneg %p90
        $region18: #{tpu_custom_call.1} parent=11 // pred_check_branch
          %346 = sbr.rel (%p344) target = $region20
        $region19: #{tpu_custom_call.1} parent=11 // pred_region
          _
        $region20: #{tpu_custom_call.1} parent=11 // pred_fallthru
          _
        // Predicated region
        $region21: #{tpu_custom_call.1} parent=11 // pred_check
          %p347 = pneg %p111
        $region22: #{tpu_custom_call.1} parent=11 // pred_check_branch
          %349 = sbr.rel (%p347) target = $region24
        $region23: #{tpu_custom_call.1} parent=11 // pred_region
          _
        $region24: #{tpu_custom_call.1} parent=11 // pred_fallthru
          _
        // Predicated region
        $region25: #{tpu_custom_call.1} parent=11 // pred_check
          %p350 = pneg %p132
        $region26: #{tpu_custom_call.1} parent=11 // pred_check_branch
          %352 = sbr.rel (%p350) target = $region28
        $region27: #{tpu_custom_call.1} parent=11 // pred_region
          _
        $region28: #{tpu_custom_call.1} parent=11 // pred_fallthru
          _
        // Predicated region
        $region29: #{tpu_custom_call.1} parent=11 // pred_check
          %p353 = pneg %p153
        $region30: #{tpu_custom_call.1} parent=11 // pred_check_branch
          %355 = sbr.rel (%p353) target = $region32
        $region31: #{tpu_custom_call.1} parent=11 // pred_region
          _
        $region32: #{tpu_custom_call.1} parent=11 // pred_fallthru
          _
        // Predicated region
        $region33: #{tpu_custom_call.1} parent=11 // pred_check
          %p356 = pneg %p174
        $region34: #{tpu_custom_call.1} parent=11 // pred_check_branch
          %358 = sbr.rel (%p356) target = $region36
        $region35: #{tpu_custom_call.1} parent=11 // pred_region
          _
        $region36: #{tpu_custom_call.1} parent=11 // pred_fallthru
          _
        // Predicated region
        $region37: #{tpu_custom_call.1} parent=11 // pred_check
          %p359 = pneg %p195
        $region38: #{tpu_custom_call.1} parent=11 // pred_check_branch
          %361 = sbr.rel (%p359) target = $region40
        $region39: #{tpu_custom_call.1} parent=11 // pred_region
          _
        $region40: #{tpu_custom_call.1} parent=11 // pred_fallthru
          _
        // Predicated region
        $region41: #{tpu_custom_call.1} parent=11 // pred_check
          %p362 = pneg %p216
        $region42: #{tpu_custom_call.1} parent=11 // pred_check_branch
          %364 = sbr.rel (%p362) target = $region44
        $region43: #{tpu_custom_call.1} parent=11 // pred_region
          _
        $region44: #{tpu_custom_call.1} parent=11 // pred_fallthru
          _
        // Predicated region
        $region45: #{tpu_custom_call.1} parent=11 // pred_check
          %p365 = pneg %p237
        $region46: #{tpu_custom_call.1} parent=11 // pred_check_branch
          %367 = sbr.rel (%p365) target = $region48
        $region47: #{tpu_custom_call.1} parent=11 // pred_region
          _
        $region48: #{tpu_custom_call.1} parent=11 // pred_fallthru
          _
        // Predicated region
        $region49: #{tpu_custom_call.1} parent=11 // pred_check
          %p368 = pneg %p258
        $region50: #{tpu_custom_call.1} parent=11 // pred_check_branch
          %370 = sbr.rel (%p368) target = $region52
        $region51: #{tpu_custom_call.1} parent=11 // pred_region
          _
        $region52: #{tpu_custom_call.1} parent=11 // pred_fallthru
          _
        // Predicated region
        $region53: #{tpu_custom_call.1} parent=11 // pred_check
          %p371 = pneg %p279
        $region54: #{tpu_custom_call.1} parent=11 // pred_check_branch
          %373 = sbr.rel (%p371) target = $region56
        $region55: #{tpu_custom_call.1} parent=11 // pred_region
          _
        $region56: #{tpu_custom_call.1} parent=11 // pred_fallthru
          _
        // Predicated region
        $region57: #{tpu_custom_call.1} parent=11 // pred_check
          %p374 = pneg %p300
        $region58: #{tpu_custom_call.1} parent=11 // pred_check_branch
          %376 = sbr.rel (%p374) target = $region60
        $region59: #{tpu_custom_call.1} parent=11 // pred_region
          _
        $region60: #{tpu_custom_call.1} parent=11 // pred_fallthru
          _
      $region12: #{tpu_custom_call.1} parent=5 // pred_fallthru
        _
      %p377 = scmp.lt.s32.totalorder %s22, 2
      // Predicated region
      $region61: #{tpu_custom_call.1} parent=5 // pred_check
        %p378 = pneg %p377
      $region62: #{tpu_custom_call.1} parent=5 // pred_check_branch
        %380 = sbr.rel (%p378) target = $region64
      $region63: #{tpu_custom_call.1} parent=5 // pred_region
        // Predicated region
        $region65: #{tpu_custom_call.1} parent=63 // pred_check
          %p381 = pneg %p42
        $region66: #{tpu_custom_call.1} parent=63 // pred_check_branch
          %383 = sbr.rel (%p381) target = $region68
        $region67: #{tpu_custom_call.1} parent=63 // pred_region
          %p384 = scmp.lt.s32.totalorder %s22, 1
          %s385 = scalar_select %p384, %s22, 1
          %s386 = smul.addr %s385, 4
          %s387 = scalar_lea.vmem %s0, %s386
        $region68: #{tpu_custom_call.1} parent=63 // pred_fallthru
          _
      $region64: #{tpu_custom_call.1} parent=5 // pred_fallthru
        _
      %p388 = scmp.le.s32.totalorder 1, %s22
      %p389 = scmp.lt.s32.totalorder %s22, 3
      %p390 = pnand %p388, %p389
      %p391 = pneg %p390
      // Predicated region
      $region69: #{tpu_custom_call.1} parent=5 // pred_check
        _
      $region70: #{tpu_custom_call.1} parent=5 // pred_check_branch
        %393 = sbr.rel (%p390) target = $region72
      $region71: #{tpu_custom_call.1} parent=5 // pred_region
        %s394 = ssub.s32 %s22, 1
        %p395 = scmp.lt.s32.totalorder %s27, 1
        %s396 = scalar_select %p395, %s27, 1
        %s397 = smul.addr %s396, 4
        %s398 = scalar_lea.vmem %s0, %s397
        %p399 = pneg %p48
        %p400 = pneg %p45
        %p401 = pneg %p69
        %p402 = pneg %p66
        %p403 = pneg %p90
        %p404 = pneg %p87
        %p405 = pneg %p111
        %p406 = pneg %p108
        %p407 = pneg %p132
        %p408 = pneg %p129
        %p409 = pneg %p153
        %p410 = pneg %p150
        %p411 = pneg %p174
        %p412 = pneg %p171
        %p413 = pneg %p195
        %p414 = pneg %p192
        %p415 = pneg %p216
        %p416 = pneg %p213
        %p417 = pneg %p237
        %p418 = pneg %p234
        %p419 = pneg %p258
        %p420 = pneg %p255
        %p421 = pneg %p279
        %p422 = pneg %p276
        %p423 = pneg %p300
        %p424 = pneg %p297
        %p425 = pneg %p326
        %p426 = pneg %p323
        %s427 = sand.u32 %s313, 1
        %s428 = scalar_lea.sflag [#allocation3], %s427
        %s429 = sand.u32 %s313, 1
        %s430 = smul.addr %s429, 8
        %s431 = scalar_lea.vmem [#allocation2], %s430
        %p432 = scmp.lt.s32.totalorder %s27, 1
        %s433 = scalar_select %p432, %s27, 1
        %s434 = smul.addr %s433, 4
        %s435 = scalar_lea.vmem %s0, %s434
        %v436 = vld [vmem:[%s435] sm:$0xf]
        %v437 = vld [vmem:[%s1] sm:$0xff]
        %v438 = vld [vmem:[%s1 + $0x8] sm:$0x1]
        %v439 = vld [vmem:[%s5] sm:$0xf]
        %v440 = vld [vmem:[%s6] sm:$0xf]
        %v441 = vld [vmem:[%s9] sm:$0xff]
        %v442 = vld [vmem:[%s10] sm:$0xff]
        %444 = vrot.lane.b32.xlu0 %v436, 73
        %v445 = vpop.permute.xlu0 %444
        %447 = vrot.lane.b32.xlu0 %v436, 9
        %v448 = vpop.permute.xlu0 %447
        %vm450 = vcmask 72704
        %v451 = vsel %vm450, %v445, %v448
        %v452 = vlaneseq
        %v453 = vshrl.u32 %v452, 7
        %v454 = vsub.s32 0, %v453
        %v455 = vrot.slane %v437, %v454
        %v456 = vmul.f32 %v451, %v455
        %457 = vrot.lane.b32.xlu0 %v436, 72
        %v458 = vpop.permute.xlu0 %457
        %460 = vrot.lane.b32.xlu0 %v436, 8
        %v461 = vpop.permute.xlu0 %460
        %vm463 = vcmask 64512
        %v464 = vsel %vm463, %v458, %v461
        %v465 = vlaneseq
        %v466 = vshrl.u32 %v465, 7
        %v467 = vsub.s32 1, %v466
        %v468 = vrot.slane %v437, %v467
        %v469 = vmul.f32 %v464, %v468
        %470 = vrot.lane.b32.xlu0 %v436, 71
        %v471 = vpop.permute.xlu0 %470
        %473 = vrot.lane.b32.xlu0 %v436, 7
        %v474 = vpop.permute.xlu0 %473
        %vm476 = vcmask 56320
        %v477 = vsel %vm476, %v471, %v474
        %v478 = vlaneseq
        %v479 = vshrl.u32 %v478, 7
        %v480 = vsub.s32 2, %v479
        %v481 = vrot.slane %v437, %v480
        %v482 = vmul.f32 %v477, %v481
        %483 = vrot.lane.b32.xlu0 %v436, 65
        %v484 = vpop.permute.xlu0 %483
        %486 = vrot.lane.b32.xlu0 %v436, 1
        %v487 = vpop.permute.xlu0 %486
        %vm489 = vcmask 7168
        %v490 = vsel %vm489, %v484, %v487
        %v491 = vlaneseq
        %v492 = vshrl.u32 %v491, 7
        %v493 = vsub.s32 3, %v492
        %v494 = vrot.slane %v437, %v493
        %v495 = vmul.f32 %v490, %v494
        %v496 = vlaneseq
        %v497 = vshrl.u32 %v496, 7
        %v498 = vsub.s32 4, %v497
        %v499 = vrot.slane %v437, %v498
        %v500 = vmul.f32 %v436, %v499
        %501 = vrot.lane.b32.xlu0 %v436, 127
        %v502 = vpop.permute.xlu0 %501
        %504 = vrot.lane.b32.xlu0 %v436, 63
        %v505 = vpop.permute.xlu0 %504
        %vm507 = vcmask 515072
        %v508 = vsel %vm507, %v502, %v505
        %v509 = vlaneseq
        %v510 = vshrl.u32 %v509, 7
        %v511 = vsub.s32 5, %v510
        %v512 = vrot.slane %v437, %v511
        %v513 = vmul.f32 %v508, %v512
        %514 = vrot.lane.b32.xlu0 %v436, 121
        %v515 = vpop.permute.xlu0 %514
        %517 = vrot.lane.b32.xlu0 %v436, 57
        %v518 = vpop.permute.xlu0 %517
        %vm520 = vcmask 465920
        %v521 = vsel %vm520, %v515, %v518
        %v522 = vlaneseq
        %v523 = vshrl.u32 %v522, 7
        %v524 = vsub.s32 6, %v523
        %v525 = vrot.slane %v437, %v524
        %v526 = vmul.f32 %v521, %v525
        %527 = vrot.lane.b32.xlu0 %v436, 120
        %v528 = vpop.permute.xlu0 %527
        %530 = vrot.lane.b32.xlu0 %v436, 56
        %v531 = vpop.permute.xlu0 %530
        %vm533 = vcmask 457728
        %v534 = vsel %vm533, %v528, %v531
        %v535 = vlaneseq
        %v536 = vshrl.u32 %v535, 7
        %v537 = vsub.s32 7, %v536
        %v538 = vrot.slane %v437, %v537
        %v539 = vmul.f32 %v534, %v538
        %540 = vrot.lane.b32.xlu0 %v436, 119
        %v541 = vpop.permute.xlu0 %540
        %543 = vrot.lane.b32.xlu0 %v436, 55
        %v544 = vpop.permute.xlu0 %543
        %vm546 = vcmask 449536
        %v547 = vsel %vm546, %v541, %v544
        %v548 = vlaneseq
        %v549 = vshrl.u32 %v548, 7
        %v550 = vsub.s32 0, %v549
        %v551 = vrot.slane %v438, %v550
        %v552 = vmul.f32 %v547, %v551
        %v554 = vrot.slane %v469, 4
        %v557 = vrot.slane %v495, 4
        %v560 = vrot.slane %v513, 4
        %v563 = vrot.slane %v539, 4
        %vm565 = vcmask 1043456
        %v566 = vsel %vm565, %v456, %v554
        %v567 = vsel %vm565, %v482, %v557
        %v568 = vsel %vm565, %v500, %v560
        %v569 = vsel %vm565, %v526, %v563
        %v570 = vld [vmem:[%s3] sm:$0xf]
        %vm571 = vcmask 293888
        %v573 = vsel %vm571, %v570, 0
        %v576 = vsel %vm565, %v552, 0
        %578 = vmatprep.subr.mxu0 0.0
        %579 = vmatpush1.msra.mxu0 %v566
        %580 = vmatprep.subr.mxu0 0.0
        %581 = vmatpush1.msra.mxu0 %v567
        %582 = vmatprep.subr.mxu0 0.0
        %583 = vmatpush1.msra.mxu0 %v568
        %584 = vmatprep.subr.mxu0 0.0
        %585 = vmatpush1.msra.mxu0 %v569
        %586 = vmatprep.subr.mxu0 0.0
        %587 = vmatpush1.msra.mxu0 %v576
        %588 = vmatprep.subr.mxu0 0.0
        %589 = vmatpush1.msra.mxu0 0.0
        %590 = vmatprep.subr.mxu0 0.0
        %591 = vmatpush1.msra.mxu0 0.0
        %592 = vmatprep.subr.mxu0 0.0
        %593 = vmatpush1.msra.mxu0 0.0
        %594 = vmatprep.subr.mxu0 0.0
        %595 = vmatpush1.msra.mxu0 0.0
        %596 = vmatprep.subr.mxu0 0.0
        %597 = vmatpush1.msra.mxu0 0.0
        %598 = vmatprep.subr.mxu0 0.0
        %599 = vmatpush1.msra.mxu0 0.0
        %600 = vmatprep.subr.mxu0 0.0
        %601 = vmatpush1.msra.mxu0 0.0
        %602 = vmatprep.subr.mxu0 0.0
        %603 = vmatpush1.msra.mxu0 0.0
        %604 = vmatprep.subr.mxu0 0.0
        %605 = vmatpush1.msra.mxu0 0.0
        %606 = vmatprep.subr.mxu0 0.0
        %607 = vmatpush1.msra.mxu0 0.0
        %608 = vmatprep.subr.mxu0 0.0
        %609 = vmatpush1.msra.mxu0 0.0
        %610 = vmatprep.subr.mxu0 0.0
        %611 = vmatpush1.msra.mxu0 0.0
        %612 = vmatprep.subr.mxu0 0.0
        %613 = vmatpush1.msra.mxu0 0.0
        %614 = vmatprep.subr.mxu0 0.0
        %615 = vmatpush1.msra.mxu0 0.0
        %616 = vmatprep.subr.mxu0 0.0
        %617 = vmatpush1.msra.mxu0 0.0
        %618 = vmatprep.subr.mxu0 0.0
        %619 = vmatpush1.msra.mxu0 0.0
        %620 = vmatprep.subr.mxu0 0.0
        %621 = vmatpush1.msra.mxu0 0.0
        %622 = vmatprep.subr.mxu0 0.0
        %623 = vmatpush1.msra.mxu0 0.0
        %624 = vmatprep.subr.mxu0 0.0
        %625 = vmatpush1.msra.mxu0 0.0
        %626 = vmatprep.subr.mxu0 0.0
        %627 = vmatpush1.msra.mxu0 0.0
        %628 = vmatprep.subr.mxu0 0.0
        %629 = vmatpush1.msra.mxu0 0.0
        %630 = vmatprep.subr.mxu0 0.0
        %631 = vmatpush1.msra.mxu0 0.0
        %632 = vmatprep.subr.mxu0 0.0
        %633 = vmatpush1.msra.mxu0 0.0
        %634 = vmatprep.subr.mxu0 0.0
        %635 = vmatpush1.msra.mxu0 0.0
        %636 = vmatprep.subr.mxu0 0.0
        %637 = vmatpush1.msra.mxu0 0.0
        %638 = vmatprep.subr.mxu0 0.0
        %639 = vmatpush1.msra.mxu0 0.0
        %640 = vmatprep.subr.mxu0 0.0
        %641 = vmatpush1.msra.mxu0 0.0
        %642 = vmatprep.mubr.f32.mxu0 0.0
        %643 = vmatmul.mubr.f32.gmra.mrb[0].mxu0 %v573
        %v644 = vpop.f32.mrb[0].mxu0
        %v645 = vadd.f32 0.0, %v644
        %v646 = vpop.f32.mrb[0].mxu0
        %647 = vdwg.mxu0
        %vm648 = vcmask 519168
        %v649 = vsel %vm648, %v645, 0.0
        %650 = vadd.xlane.f32.xlu0 %v649
        %v651 = vpop.xlane.xlu0 %650
        %v652 = vsel %vm565, %v651, 0.0
        %v653 = vrot.slane %v652, 4
        %v654 = vadd.f32 %v652, %v653
        %v655 = vrot.slane %v654, 2
        %v656 = vadd.f32 %v654, %v655
        %v657 = vrot.slane %v656, 1
        %v658 = vadd.f32 %v656, %v657
        %v659 = vmul.f32 %v658, 0.00390625
        %v660 = vmul.f32 %v645, %v645
        %v661 = vsel %vm648, %v660, 0.0
        %662 = vadd.xlane.f32.xlu0 %v661
        %v663 = vpop.xlane.xlu0 %662
        %v664 = vsel %vm565, %v663, 0.0
        %v665 = vrot.slane %v664, 4
        %v666 = vadd.f32 %v664, %v665
        %v667 = vrot.slane %v666, 2
        %v668 = vadd.f32 %v666, %v667
        %v669 = vrot.slane %v668, 1
        %v670 = vadd.f32 %v668, %v669
        %v671 = vmul.f32 %v670, 0.00390625
        %v672 = vmul.f32 %v659, %v659
        %v673 = vsub.f32 %v671, %v672
        %v674 = vadd.f32 %v673, 1e-05
        %v675 = vrsqrt.pop %v674
        %v676 = vsub.f32 %v645, %v659
        %v677 = vmul.f32 %v676, %v675
        %679 = vset.pattern.permute.xlu0 0
        %680 = vperm.xlu0 %679, %v439
        %v681 = vpop.permute.xlu0 %680
        %v683 = vmul.f32 %v677, %v681
        %685 = vset.pattern.permute.xlu0 0
        %686 = vperm.xlu0 %685, %v440
        %v687 = vpop.permute.xlu0 %686
        %v689 = vadd.f32 %v683, %v687
        %v690 = vmul.f32 %v689, 0.5
        %v691 = vmul.f32 %v689, 0.044715
        %v692 = vmul.f32 %v691, %v689
        %v693 = vmul.f32 %v692, %v689
        %v694 = vadd.f32 %v689, %v693
        %v695 = vmul.f32 %v694, 0.7978846
        %v696 = vtanh.pop %v695
        %v697 = vadd.f32 %v696, 1.0
        %v698 = vmul.f32 %v690, %v697
        %700 = vrot.lane.b32.xlu0 %v698, 73
        %v701 = vpop.permute.xlu0 %700
        %703 = vrot.lane.b32.xlu0 %v698, 9
        %v704 = vpop.permute.xlu0 %703
        %v706 = vsel %vm450, %v701, %v704
        %v707 = vmul.f32 %v706, %v455
        %708 = vrot.lane.b32.xlu0 %v698, 72
        %v709 = vpop.permute.xlu0 %708
        %711 = vrot.lane.b32.xlu0 %v698, 8
        %v712 = vpop.permute.xlu0 %711
        %v714 = vsel %vm463, %v709, %v712
        %v715 = vmul.f32 %v714, %v468
        %716 = vrot.lane.b32.xlu0 %v698, 71
        %v717 = vpop.permute.xlu0 %716
        %719 = vrot.lane.b32.xlu0 %v698, 7
        %v720 = vpop.permute.xlu0 %719
        %v722 = vsel %vm476, %v717, %v720
        %v723 = vmul.f32 %v722, %v481
        %724 = vrot.lane.b32.xlu0 %v698, 65
        %v725 = vpop.permute.xlu0 %724
        %727 = vrot.lane.b32.xlu0 %v698, 1
        %v728 = vpop.permute.xlu0 %727
        %v730 = vsel %vm489, %v725, %v728
        %v731 = vmul.f32 %v730, %v494
        %v732 = vmul.f32 %v698, %v499
        %733 = vrot.lane.b32.xlu0 %v698, 127
        %v734 = vpop.permute.xlu0 %733
        %736 = vrot.lane.b32.xlu0 %v698, 63
        %v737 = vpop.permute.xlu0 %736
        %v739 = vsel %vm507, %v734, %v737
        %v740 = vmul.f32 %v739, %v512
        %741 = vrot.lane.b32.xlu0 %v698, 121
        %v742 = vpop.permute.xlu0 %741
        %744 = vrot.lane.b32.xlu0 %v698, 57
        %v745 = vpop.permute.xlu0 %744
        %v747 = vsel %vm520, %v742, %v745
        %v748 = vmul.f32 %v747, %v525
        %749 = vrot.lane.b32.xlu0 %v698, 120
        %v750 = vpop.permute.xlu0 %749
        %752 = vrot.lane.b32.xlu0 %v698, 56
        %v753 = vpop.permute.xlu0 %752
        %v755 = vsel %vm533, %v750, %v753
        %v756 = vmul.f32 %v755, %v538
        %757 = vrot.lane.b32.xlu0 %v698, 119
        %v758 = vpop.permute.xlu0 %757
        %760 = vrot.lane.b32.xlu0 %v698, 55
        %v761 = vpop.permute.xlu0 %760
        %v763 = vsel %vm546, %v758, %v761
        %v764 = vmul.f32 %v763, %v551
        %v766 = vrot.slane %v715, 4
        %v769 = vrot.slane %v731, 4
        %v772 = vrot.slane %v740, 4
        %v775 = vrot.slane %v756, 4
        %v777 = vsel %vm565, %v707, %v766
        %v778 = vsel %vm565, %v723, %v769
        %v779 = vsel %vm565, %v732, %v772
        %v780 = vsel %vm565, %v748, %v775
        %v781 = vld [vmem:[%s4] sm:$0xf]
        %v783 = vsel %vm571, %v781, 0
        %v786 = vsel %vm565, %v764, 0
        %788 = vmatprep.subr.mxu0 0.0
        %789 = vmatpush1.msra.mxu0 %v777
        %790 = vmatprep.subr.mxu0 0.0
        %791 = vmatpush1.msra.mxu0 %v778
        %792 = vmatprep.subr.mxu0 0.0
        %793 = vmatpush1.msra.mxu0 %v779
        %794 = vmatprep.subr.mxu0 0.0
        %795 = vmatpush1.msra.mxu0 %v780
        %796 = vmatprep.subr.mxu0 0.0
        %797 = vmatpush1.msra.mxu0 %v786
        %798 = vmatprep.subr.mxu0 0.0
        %799 = vmatpush1.msra.mxu0 0.0
        %800 = vmatprep.subr.mxu0 0.0
        %801 = vmatpush1.msra.mxu0 0.0
        %802 = vmatprep.subr.mxu0 0.0
        %803 = vmatpush1.msra.mxu0 0.0
        %804 = vmatprep.subr.mxu0 0.0
        %805 = vmatpush1.msra.mxu0 0.0
        %806 = vmatprep.subr.mxu0 0.0
        %807 = vmatpush1.msra.mxu0 0.0
        %808 = vmatprep.subr.mxu0 0.0
        %809 = vmatpush1.msra.mxu0 0.0
        %810 = vmatprep.subr.mxu0 0.0
        %811 = vmatpush1.msra.mxu0 0.0
        %812 = vmatprep.subr.mxu0 0.0
        %813 = vmatpush1.msra.mxu0 0.0
        %814 = vmatprep.subr.mxu0 0.0
        %815 = vmatpush1.msra.mxu0 0.0
        %816 = vmatprep.subr.mxu0 0.0
        %817 = vmatpush1.msra.mxu0 0.0
        %818 = vmatprep.subr.mxu0 0.0
        %819 = vmatpush1.msra.mxu0 0.0
        %820 = vmatprep.subr.mxu0 0.0
        %821 = vmatpush1.msra.mxu0 0.0
        %822 = vmatprep.subr.mxu0 0.0
        %823 = vmatpush1.msra.mxu0 0.0
        %824 = vmatprep.subr.mxu0 0.0
        %825 = vmatpush1.msra.mxu0 0.0
        %826 = vmatprep.subr.mxu0 0.0
        %827 = vmatpush1.msra.mxu0 0.0
        %828 = vmatprep.subr.mxu0 0.0
        %829 = vmatpush1.msra.mxu0 0.0
        %830 = vmatprep.subr.mxu0 0.0
        %831 = vmatpush1.msra.mxu0 0.0
        %832 = vmatprep.subr.mxu0 0.0
        %833 = vmatpush1.msra.mxu0 0.0
        %834 = vmatprep.subr.mxu0 0.0
        %835 = vmatpush1.msra.mxu0 0.0
        %836 = vmatprep.subr.mxu0 0.0
        %837 = vmatpush1.msra.mxu0 0.0
        %838 = vmatprep.subr.mxu0 0.0
        %839 = vmatpush1.msra.mxu0 0.0
        %840 = vmatprep.subr.mxu0 0.0
        %841 = vmatpush1.msra.mxu0 0.0
        %842 = vmatprep.subr.mxu0 0.0
        %843 = vmatpush1.msra.mxu0 0.0
        %844 = vmatprep.subr.mxu0 0.0
        %845 = vmatpush1.msra.mxu0 0.0
        %846 = vmatprep.subr.mxu0 0.0
        %847 = vmatpush1.msra.mxu0 0.0
        %848 = vmatprep.subr.mxu0 0.0
        %849 = vmatpush1.msra.mxu0 0.0
        %850 = vmatprep.subr.mxu0 0.0
        %851 = vmatpush1.msra.mxu0 0.0
        %852 = vmatprep.mubr.f32.mxu0 0.0
        %853 = vmatmul.mubr.f32.gmra.mrb[0].mxu0 %v783
        %v854 = vpop.f32.mrb[0].mxu0
        %v855 = vadd.f32 0.0, %v854
        %v856 = vpop.f32.mrb[0].mxu0
        %857 = vdwg.mxu0
        %v858 = vsel %vm648, %v855, 0.0
        %859 = vadd.xlane.f32.xlu0 %v858
        %v860 = vpop.xlane.xlu0 %859
        %v861 = vsel %vm565, %v860, 0.0
        %v862 = vrot.slane %v861, 4
        %v863 = vadd.f32 %v861, %v862
        %v864 = vrot.slane %v863, 2
        %v865 = vadd.f32 %v863, %v864
        %v866 = vrot.slane %v865, 1
        %v867 = vadd.f32 %v865, %v866
        %v868 = vmul.f32 %v867, 0.00390625
        %v869 = vmul.f32 %v855, %v855
        %v870 = vsel %vm648, %v869, 0.0
        %871 = vadd.xlane.f32.xlu0 %v870
        %v872 = vpop.xlane.xlu0 %871
        %v873 = vsel %vm565, %v872, 0.0
        %v874 = vrot.slane %v873, 4
        %v875 = vadd.f32 %v873, %v874
        %v876 = vrot.slane %v875, 2
        %v877 = vadd.f32 %v875, %v876
        %v878 = vrot.slane %v877, 1
        %v879 = vadd.f32 %v877, %v878
        %v880 = vmul.f32 %v879, 0.00390625
        %v881 = vmul.f32 %v868, %v868
        %v882 = vsub.f32 %v880, %v881
        %v883 = vadd.f32 %v882, 1e-05
        %v884 = vrsqrt.pop %v883
        %v885 = vsub.f32 %v855, %v868
        %v886 = vmul.f32 %v885, %v884
        %v887 = vmul.f32 %v886, %v681
        %v888 = vadd.f32 %v887, %v687
        %v889 = vadd.f32 %v888, %v436
        %v890 = vmul.f32 %v889, 0.5
        %v891 = vmul.f32 %v889, 0.044715
        %v892 = vmul.f32 %v891, %v889
        %v893 = vmul.f32 %v892, %v889
        %v894 = vadd.f32 %v889, %v893
        %v895 = vmul.f32 %v894, 0.7978846
        %v896 = vtanh.pop %v895
        %v897 = vadd.f32 %v896, 1.0
        %v898 = vmul.f32 %v890, %v897
        %900 = vrot.lane.b32.xlu0 %v898, 73
        %v901 = vpop.permute.xlu0 %900
        %903 = vrot.lane.b32.xlu0 %v898, 9
        %v904 = vpop.permute.xlu0 %903
        %v906 = vsel %vm450, %v901, %v904
        %v907 = vmul.f32 %v906, %v455
        %908 = vrot.lane.b32.xlu0 %v898, 72
        %v909 = vpop.permute.xlu0 %908
        %911 = vrot.lane.b32.xlu0 %v898, 8
        %v912 = vpop.permute.xlu0 %911
        %v914 = vsel %vm463, %v909, %v912
        %v915 = vmul.f32 %v914, %v468
        %916 = vrot.lane.b32.xlu0 %v898, 71
        %v917 = vpop.permute.xlu0 %916
        %919 = vrot.lane.b32.xlu0 %v898, 7
        %v920 = vpop.permute.xlu0 %919
        %v922 = vsel %vm476, %v917, %v920
        %v923 = vmul.f32 %v922, %v481
        %924 = vrot.lane.b32.xlu0 %v898, 65
        %v925 = vpop.permute.xlu0 %924
        %927 = vrot.lane.b32.xlu0 %v898, 1
        %v928 = vpop.permute.xlu0 %927
        %v930 = vsel %vm489, %v925, %v928
        %v931 = vmul.f32 %v930, %v494
        %v932 = vmul.f32 %v898, %v499
        %933 = vrot.lane.b32.xlu0 %v898, 127
        %v934 = vpop.permute.xlu0 %933
        %936 = vrot.lane.b32.xlu0 %v898, 63
        %v937 = vpop.permute.xlu0 %936
        %v939 = vsel %vm507, %v934, %v937
        %v940 = vmul.f32 %v939, %v512
        %941 = vrot.lane.b32.xlu0 %v898, 121
        %v942 = vpop.permute.xlu0 %941
        %944 = vrot.lane.b32.xlu0 %v898, 57
        %v945 = vpop.permute.xlu0 %944
        %v947 = vsel %vm520, %v942, %v945
        %v948 = vmul.f32 %v947, %v525
        %949 = vrot.lane.b32.xlu0 %v898, 120
        %v950 = vpop.permute.xlu0 %949
        %952 = vrot.lane.b32.xlu0 %v898, 56
        %v953 = vpop.permute.xlu0 %952
        %v955 = vsel %vm533, %v950, %v953
        %v956 = vmul.f32 %v955, %v538
        %957 = vrot.lane.b32.xlu0 %v898, 119
        %v958 = vpop.permute.xlu0 %957
        %960 = vrot.lane.b32.xlu0 %v898, 55
        %v961 = vpop.permute.xlu0 %960
        %v963 = vsel %vm546, %v958, %v961
        %v964 = vmul.f32 %v963, %v551
        %v966 = vrot.slane %v915, 4
        %v969 = vrot.slane %v931, 4
        %v972 = vrot.slane %v940, 4
        %v975 = vrot.slane %v956, 4
        %v977 = vsel %vm565, %v907, %v966
        %v978 = vsel %vm565, %v923, %v969
        %v979 = vsel %vm565, %v932, %v972
        %v980 = vsel %vm565, %v948, %v975
        %v981 = vld [vmem:[%s7] sm:$0xff]
        %v983 = vsel %vm571, %v981, 0
        %v986 = vsel %vm565, %v964, 0
        %988 = vmatprep.subr.mxu0 0.0
        %989 = vmatpush1.msra.mxu0 %v977
        %990 = vmatprep.subr.mxu0 0.0
        %991 = vmatpush1.msra.mxu0 %v978
        %992 = vmatprep.subr.mxu0 0.0
        %993 = vmatpush1.msra.mxu0 %v979
        %994 = vmatprep.subr.mxu0 0.0
        %995 = vmatpush1.msra.mxu0 %v980
        %996 = vmatprep.subr.mxu0 0.0
        %997 = vmatpush1.msra.mxu0 %v986
        %998 = vmatprep.subr.mxu0 0.0
        %999 = vmatpush1.msra.mxu0 0.0
        %1000 = vmatprep.subr.mxu0 0.0
        %1001 = vmatpush1.msra.mxu0 0.0
        %1002 = vmatprep.subr.mxu0 0.0
        %1003 = vmatpush1.msra.mxu0 0.0
        %1004 = vmatprep.subr.mxu0 0.0
        %1005 = vmatpush1.msra.mxu0 0.0
        %1006 = vmatprep.subr.mxu0 0.0
        %1007 = vmatpush1.msra.mxu0 0.0
        %1008 = vmatprep.subr.mxu0 0.0
        %1009 = vmatpush1.msra.mxu0 0.0
        %1010 = vmatprep.subr.mxu0 0.0
        %1011 = vmatpush1.msra.mxu0 0.0
        %1012 = vmatprep.subr.mxu0 0.0
        %1013 = vmatpush1.msra.mxu0 0.0
        %1014 = vmatprep.subr.mxu0 0.0
        %1015 = vmatpush1.msra.mxu0 0.0
        %1016 = vmatprep.subr.mxu0 0.0
        %1017 = vmatpush1.msra.mxu0 0.0
        %1018 = vmatprep.subr.mxu0 0.0
        %1019 = vmatpush1.msra.mxu0 0.0
        %1020 = vmatprep.subr.mxu0 0.0
        %1021 = vmatpush1.msra.mxu0 0.0
        %1022 = vmatprep.subr.mxu0 0.0
        %1023 = vmatpush1.msra.mxu0 0.0
        %1024 = vmatprep.subr.mxu0 0.0
        %1025 = vmatpush1.msra.mxu0 0.0
        %1026 = vmatprep.subr.mxu0 0.0
        %1027 = vmatpush1.msra.mxu0 0.0
        %1028 = vmatprep.subr.mxu0 0.0
        %1029 = vmatpush1.msra.mxu0 0.0
        %1030 = vmatprep.subr.mxu0 0.0
        %1031 = vmatpush1.msra.mxu0 0.0
        %1032 = vmatprep.subr.mxu0 0.0
        %1033 = vmatpush1.msra.mxu0 0.0
        %1034 = vmatprep.subr.mxu0 0.0
        %1035 = vmatpush1.msra.mxu0 0.0
        %1036 = vmatprep.subr.mxu0 0.0
        %1037 = vmatpush1.msra.mxu0 0.0
        %1038 = vmatprep.subr.mxu0 0.0
        %1039 = vmatpush1.msra.mxu0 0.0
        %1040 = vmatprep.subr.mxu0 0.0
        %1041 = vmatpush1.msra.mxu0 0.0
        %1042 = vmatprep.subr.mxu0 0.0
        %1043 = vmatpush1.msra.mxu0 0.0
        %1044 = vmatprep.subr.mxu0 0.0
        %1045 = vmatpush1.msra.mxu0 0.0
        %1046 = vmatprep.subr.mxu0 0.0
        %1047 = vmatpush1.msra.mxu0 0.0
        %1048 = vmatprep.subr.mxu0 0.0
        %1049 = vmatpush1.msra.mxu0 0.0
        %1050 = vmatprep.subr.mxu0 0.0
        %1051 = vmatpush1.msra.mxu0 0.0
        %1052 = vmatprep.mubr.f32.mxu0 0.0
        %1053 = vmatmul.mubr.f32.gmra.mrb[0].mxu0 %v983
        %v1054 = vpop.f32.mrb[0].mxu0
        %v1055 = vadd.f32 0.0, %v1054
        %v1056 = vpop.f32.mrb[0].mxu0
        %1057 = vdwg.mxu0
        %vm1058 = vcmask 523264
        %v1059 = vsel %vm1058, %v1055, 0.0
        %1060 = vadd.xlane.f32.xlu0 %v1059
        %v1061 = vpop.xlane.xlu0 %1060
        %v1062 = vrot.slane %v1061, 4
        %v1063 = vadd.f32 %v1061, %v1062
        %v1064 = vrot.slane %v1063, 2
        %v1065 = vadd.f32 %v1063, %v1064
        %v1066 = vrot.slane %v1065, 1
        %v1067 = vadd.f32 %v1065, %v1066
        %v1068 = vmul.f32 %v1067, 0.001953125
        %v1069 = vmul.f32 %v1055, %v1055
        %v1070 = vsel %vm1058, %v1069, 0.0
        %1071 = vadd.xlane.f32.xlu0 %v1070
        %v1072 = vpop.xlane.xlu0 %1071
        %v1073 = vrot.slane %v1072, 4
        %v1074 = vadd.f32 %v1072, %v1073
        %v1075 = vrot.slane %v1074, 2
        %v1076 = vadd.f32 %v1074, %v1075
        %v1077 = vrot.slane %v1076, 1
        %v1078 = vadd.f32 %v1076, %v1077
        %v1079 = vmul.f32 %v1078, 0.001953125
        %v1080 = vmul.f32 %v1068, %v1068
        %v1081 = vsub.f32 %v1079, %v1080
        %v1082 = vadd.f32 %v1081, 1e-05
        %v1083 = vrsqrt.pop %v1082
        %v1084 = vsub.f32 %v1055, %v1068
        %v1085 = vmul.f32 %v1084, %v1083
        %1087 = vset.pattern.permute.xlu0 0
        %1088 = vperm.xlu0 %1087, %v441
        %v1089 = vpop.permute.xlu0 %1088
        %v1091 = vmul.f32 %v1085, %v1089
        %1093 = vset.pattern.permute.xlu0 0
        %1094 = vperm.xlu0 %1093, %v442
        %v1095 = vpop.permute.xlu0 %1094
        %v1097 = vadd.f32 %v1091, %v1095
        %v1098 = vmul.f32 %v1097, 0.5
        %v1099 = vmul.f32 %v1097, 0.044715
        %v1100 = vmul.f32 %v1099, %v1097
        %v1101 = vmul.f32 %v1100, %v1097
        %v1102 = vadd.f32 %v1097, %v1101
        %v1103 = vmul.f32 %v1102, 0.7978846
        %v1104 = vtanh.pop %v1103
        %v1105 = vadd.f32 %v1104, 1.0
        %v1106 = vmul.f32 %v1098, %v1105
        %1108 = vrot.lane.b32.xlu0 %v1106, 73
        %v1109 = vpop.permute.xlu0 %1108
        %1111 = vrot.lane.b32.xlu0 %v1106, 9
        %v1112 = vpop.permute.xlu0 %1111
        %v1114 = vsel %vm450, %v1109, %v1112
        %v1115 = vmul.f32 %v1114, %v455
        %1116 = vrot.lane.b32.xlu0 %v1106, 72
        %v1117 = vpop.permute.xlu0 %1116
        %1119 = vrot.lane.b32.xlu0 %v1106, 8
        %v1120 = vpop.permute.xlu0 %1119
        %v1122 = vsel %vm463, %v1117, %v1120
        %v1123 = vmul.f32 %v1122, %v468
        %1124 = vrot.lane.b32.xlu0 %v1106, 71
        %v1125 = vpop.permute.xlu0 %1124
        %1127 = vrot.lane.b32.xlu0 %v1106, 7
        %v1128 = vpop.permute.xlu0 %1127
        %v1130 = vsel %vm476, %v1125, %v1128
        %v1131 = vmul.f32 %v1130, %v481
        %1132 = vrot.lane.b32.xlu0 %v1106, 65
        %v1133 = vpop.permute.xlu0 %1132
        %1135 = vrot.lane.b32.xlu0 %v1106, 1
        %v1136 = vpop.permute.xlu0 %1135
        %v1138 = vsel %vm489, %v1133, %v1136
        %v1139 = vmul.f32 %v1138, %v494
        %v1140 = vmul.f32 %v1106, %v499
        %1141 = vrot.lane.b32.xlu0 %v1106, 127
        %v1142 = vpop.permute.xlu0 %1141
        %1144 = vrot.lane.b32.xlu0 %v1106, 63
        %v1145 = vpop.permute.xlu0 %1144
        %v1147 = vsel %vm507, %v1142, %v1145
        %v1148 = vmul.f32 %v1147, %v512
        %1149 = vrot.lane.b32.xlu0 %v1106, 121
        %v1150 = vpop.permute.xlu0 %1149
        %1152 = vrot.lane.b32.xlu0 %v1106, 57
        %v1153 = vpop.permute.xlu0 %1152
        %v1155 = vsel %vm520, %v1150, %v1153
        %v1156 = vmul.f32 %v1155, %v525
        %1157 = vrot.lane.b32.xlu0 %v1106, 120
        %v1158 = vpop.permute.xlu0 %1157
        %1160 = vrot.lane.b32.xlu0 %v1106, 56
        %v1161 = vpop.permute.xlu0 %1160
        %v1163 = vsel %vm533, %v1158, %v1161
        %v1164 = vmul.f32 %v1163, %v538
        %1165 = vrot.lane.b32.xlu0 %v1106, 119
        %v1166 = vpop.permute.xlu0 %1165
        %1168 = vrot.lane.b32.xlu0 %v1106, 55
        %v1169 = vpop.permute.xlu0 %1168
        %v1171 = vsel %vm546, %v1166, %v1169
        %v1172 = vmul.f32 %v1171, %v551
        %v1173 = vld [vmem:[%s8] sm:$0xff]
        %vm1174 = vcmask 588800
        %v1176 = vsel %vm1174, %v1173, 0
        %1178 = vmatprep.subr.mxu0 0.0
        %1179 = vmatpush1.msra.mxu0 %v1115
        %1180 = vmatprep.subr.mxu0 0.0
        %1181 = vmatpush1.msra.mxu0 %v1123
        %1182 = vmatprep.subr.mxu0 0.0
        %1183 = vmatpush1.msra.mxu0 %v1131
        %1184 = vmatprep.subr.mxu0 0.0
        %1185 = vmatpush1.msra.mxu0 %v1139
        %1186 = vmatprep.subr.mxu0 0.0
        %1187 = vmatpush1.msra.mxu0 %v1140
        %1188 = vmatprep.subr.mxu0 0.0
        %1189 = vmatpush1.msra.mxu0 %v1148
        %1190 = vmatprep.subr.mxu0 0.0
        %1191 = vmatpush1.msra.mxu0 %v1156
        %1192 = vmatprep.subr.mxu0 0.0
        %1193 = vmatpush1.msra.mxu0 %v1164
        %1194 = vmatprep.subr.mxu0 0.0
        %1195 = vmatpush1.msra.mxu0 %v1172
        %1196 = vmatprep.subr.mxu0 0.0
        %1197 = vmatpush1.msra.mxu0 0.0
        %1198 = vmatprep.subr.mxu0 0.0
        %1199 = vmatpush1.msra.mxu0 0.0
        %1200 = vmatprep.subr.mxu0 0.0
        %1201 = vmatpush1.msra.mxu0 0.0
        %1202 = vmatprep.subr.mxu0 0.0
        %1203 = vmatpush1.msra.mxu0 0.0
        %1204 = vmatprep.subr.mxu0 0.0
        %1205 = vmatpush1.msra.mxu0 0.0
        %1206 = vmatprep.subr.mxu0 0.0
        %1207 = vmatpush1.msra.mxu0 0.0
        %1208 = vmatprep.subr.mxu0 0.0
        %1209 = vmatpush1.msra.mxu0 0.0
        %1210 = vmatprep.subr.mxu0 0.0
        %1211 = vmatpush1.msra.mxu0 0.0
        %1212 = vmatprep.subr.mxu0 0.0
        %1213 = vmatpush1.msra.mxu0 0.0
        %1214 = vmatprep.subr.mxu0 0.0
        %1215 = vmatpush1.msra.mxu0 0.0
        %1216 = vmatprep.subr.mxu0 0.0
        %1217 = vmatpush1.msra.mxu0 0.0
        %1218 = vmatprep.subr.mxu0 0.0
        %1219 = vmatpush1.msra.mxu0 0.0
        %1220 = vmatprep.subr.mxu0 0.0
        %1221 = vmatpush1.msra.mxu0 0.0
        %1222 = vmatprep.subr.mxu0 0.0
        %1223 = vmatpush1.msra.mxu0 0.0
        %1224 = vmatprep.subr.mxu0 0.0
        %1225 = vmatpush1.msra.mxu0 0.0
        %1226 = vmatprep.subr.mxu0 0.0
        %1227 = vmatpush1.msra.mxu0 0.0
        %1228 = vmatprep.subr.mxu0 0.0
        %1229 = vmatpush1.msra.mxu0 0.0
        %1230 = vmatprep.subr.mxu0 0.0
        %1231 = vmatpush1.msra.mxu0 0.0
        %1232 = vmatprep.subr.mxu0 0.0
        %1233 = vmatpush1.msra.mxu0 0.0
        %1234 = vmatprep.subr.mxu0 0.0
        %1235 = vmatpush1.msra.mxu0 0.0
        %1236 = vmatprep.subr.mxu0 0.0
        %1237 = vmatpush1.msra.mxu0 0.0
        %1238 = vmatprep.subr.mxu0 0.0
        %1239 = vmatpush1.msra.mxu0 0.0
        %1240 = vmatprep.subr.mxu0 0.0
        %1241 = vmatpush1.msra.mxu0 0.0
        %1242 = vmatprep.mubr.f32.mxu0 0.0
        %1243 = vmatmul.mubr.f32.gmra.mrb[0].mxu0 %v1176
        %v1244 = vpop.f32.mrb[0].mxu0
        %v1245 = vadd.f32 0.0, %v1244
        %v1246 = vpop.f32.mrb[0].mxu0
        %1247 = vdwg.mxu0
        %v1248 = vsel %vm1058, %v1245, 0.0
        %1249 = vadd.xlane.f32.xlu0 %v1248
        %v1250 = vpop.xlane.xlu0 %1249
        %v1251 = vrot.slane %v1250, 4
        %v1252 = vadd.f32 %v1250, %v1251
        %v1253 = vrot.slane %v1252, 2
        %v1254 = vadd.f32 %v1252, %v1253
        %v1255 = vrot.slane %v1254, 1
        %v1256 = vadd.f32 %v1254, %v1255
        %v1257 = vmul.f32 %v1256, 0.001953125
        %v1258 = vmul.f32 %v1245, %v1245
        %v1259 = vsel %vm1058, %v1258, 0.0
        %1260 = vadd.xlane.f32.xlu0 %v1259
        %v1261 = vpop.xlane.xlu0 %1260
        %v1262 = vrot.slane %v1261, 4
        %v1263 = vadd.f32 %v1261, %v1262
        %v1264 = vrot.slane %v1263, 2
        %v1265 = vadd.f32 %v1263, %v1264
        %v1266 = vrot.slane %v1265, 1
        %v1267 = vadd.f32 %v1265, %v1266
        %v1268 = vmul.f32 %v1267, 0.001953125
        %v1269 = vmul.f32 %v1257, %v1257
        %v1270 = vsub.f32 %v1268, %v1269
        %v1271 = vadd.f32 %v1270, 1e-05
        %v1272 = vrsqrt.pop %v1271
        %v1273 = vsub.f32 %v1245, %v1257
        %v1274 = vmul.f32 %v1273, %v1272
        %v1275 = vmul.f32 %v1274, %v1089
        %v1276 = vadd.f32 %v1275, %v1095
        %v1277 = vmul.f32 %v1276, 0.5
        %v1278 = vmul.f32 %v1276, 0.044715
        %v1279 = vmul.f32 %v1278, %v1276
        %v1280 = vmul.f32 %v1279, %v1276
        %v1281 = vadd.f32 %v1276, %v1280
        %v1282 = vmul.f32 %v1281, 0.7978846
        %v1283 = vtanh.pop %v1282
        %v1284 = vadd.f32 %v1283, 1.0
        %v1285 = vmul.f32 %v1277, %v1284
        %v1286 = vld [vmem:[%s2] sm:$0xff]
        %v1287 = vld [vmem:[%s2 + $0x8] sm:$0xff]
        %v1288 = vld [vmem:[%s2 + $0x10] sm:$0xff]
        %v1289 = vld [vmem:[%s2 + $0x18] sm:$0xff]
        %v1290 = vsub.f32 0.0, %v1286
        %v1291 = vsub.f32 0.0, %v1287
        %v1292 = vsub.f32 0.0, %v1288
        %v1293 = vsub.f32 0.0, %v1289
        %v1294 = vmul.f32 %v1290, 1.442695
        %v1295 = vpow.pop %v1294
        %v1296 = vmul.f32 %v1291, 1.442695
        %v1297 = vpow.pop %v1296
        %v1298 = vmul.f32 %v1292, 1.442695
        %v1299 = vpow.pop %v1298
        %v1300 = vmul.f32 %v1293, 1.442695
        %v1301 = vpow.pop %v1300
        %v1302 = vadd.f32 %v1295, 1.0
        %v1303 = vadd.f32 %v1297, 1.0
        %v1304 = vadd.f32 %v1299, 1.0
        %v1305 = vadd.f32 %v1301, 1.0
        %v1306 = vrcp.pop %v1302
        %v1307 = vmul.f32 1.0, %v1306
        %v1308 = vrcp.pop %v1303
        %v1309 = vmul.f32 1.0, %v1308
        %v1310 = vrcp.pop %v1304
        %v1311 = vmul.f32 1.0, %v1310
        %v1312 = vrcp.pop %v1305
        %v1313 = vmul.f32 1.0, %v1312
        %v1314 = vmul.f32 %v1286, %v1307
        %v1315 = vmul.f32 %v1287, %v1309
        %v1316 = vmul.f32 %v1288, %v1311
        %v1317 = vmul.f32 %v1289, %v1313
        %v1318 = vld [vmem:[%s11] sm:$0xff]
        %v1319 = vld [vmem:[%s12] sm:$0xff]
        %1321 = vset.pattern.permute.xlu0 0
        %1322 = vperm.xlu0 %1321, %v1319
        %v1323 = vpop.permute.xlu0 %1322
        %vm1325 = vcmask 261120
        %v1327 = vsel %vm1325, %v1318, 0
        %1329 = vmatprep.subr.mxu0 0.0
        %1330 = vmatpush1.msra.mxu0 %v1314
        %1331 = vmatprep.subr.mxu0 0.0
        %1332 = vmatpush1.msra.mxu0 %v1315
        %1333 = vmatprep.subr.mxu0 0.0
        %1334 = vmatpush1.msra.mxu0 %v1316
        %1335 = vmatprep.subr.mxu0 0.0
        %1336 = vmatpush1.msra.mxu0 %v1317
        %1337 = vmatprep.subr.mxu0 0.0
        %1338 = vmatpush1.msra.mxu0 0.0
        %1339 = vmatprep.subr.mxu0 0.0
        %1340 = vmatpush1.msra.mxu0 0.0
        %1341 = vmatprep.subr.mxu0 0.0
        %1342 = vmatpush1.msra.mxu0 0.0
        %1343 = vmatprep.subr.mxu0 0.0
        %1344 = vmatpush1.msra.mxu0 0.0
        %1345 = vmatprep.subr.mxu0 0.0
        %1346 = vmatpush1.msra.mxu0 0.0
        %1347 = vmatprep.subr.mxu0 0.0
        %1348 = vmatpush1.msra.mxu0 0.0
        %1349 = vmatprep.subr.mxu0 0.0
        %1350 = vmatpush1.msra.mxu0 0.0
        %1351 = vmatprep.subr.mxu0 0.0
        %1352 = vmatpush1.msra.mxu0 0.0
        %1353 = vmatprep.subr.mxu0 0.0
        %1354 = vmatpush1.msra.mxu0 0.0
        %1355 = vmatprep.subr.mxu0 0.0
        %1356 = vmatpush1.msra.mxu0 0.0
        %1357 = vmatprep.subr.mxu0 0.0
        %1358 = vmatpush1.msra.mxu0 0.0
        %1359 = vmatprep.subr.mxu0 0.0
        %1360 = vmatpush1.msra.mxu0 0.0
        %1361 = vmatprep.subr.mxu0 0.0
        %1362 = vmatpush1.msra.mxu0 0.0
        %1363 = vmatprep.subr.mxu0 0.0
        %1364 = vmatpush1.msra.mxu0 0.0
        %1365 = vmatprep.subr.mxu0 0.0
        %1366 = vmatpush1.msra.mxu0 0.0
        %1367 = vmatprep.subr.mxu0 0.0
        %1368 = vmatpush1.msra.mxu0 0.0
        %1369 = vmatprep.subr.mxu0 0.0
        %1370 = vmatpush1.msra.mxu0 0.0
        %1371 = vmatprep.subr.mxu0 0.0
        %1372 = vmatpush1.msra.mxu0 0.0
        %1373 = vmatprep.subr.mxu0 0.0
        %1374 = vmatpush1.msra.mxu0 0.0
        %1375 = vmatprep.subr.mxu0 0.0
        %1376 = vmatpush1.msra.mxu0 0.0
        %1377 = vmatprep.subr.mxu0 0.0
        %1378 = vmatpush1.msra.mxu0 0.0
        %1379 = vmatprep.subr.mxu0 0.0
        %1380 = vmatpush1.msra.mxu0 0.0
        %1381 = vmatprep.subr.mxu0 0.0
        %1382 = vmatpush1.msra.mxu0 0.0
        %1383 = vmatprep.subr.mxu0 0.0
        %1384 = vmatpush1.msra.mxu0 0.0
        %1385 = vmatprep.subr.mxu0 0.0
        %1386 = vmatpush1.msra.mxu0 0.0
        %1387 = vmatprep.subr.mxu0 0.0
        %1388 = vmatpush1.msra.mxu0 0.0
        %1389 = vmatprep.subr.mxu0 0.0
        %1390 = vmatpush1.msra.mxu0 0.0
        %1391 = vmatprep.subr.mxu0 0.0
        %1392 = vmatpush1.msra.mxu0 0.0
        %1393 = vmatprep.mubr.f32.mxu0 0.0
        %1394 = vmatmul.mubr.f32.gmra.mrb[0].mxu0 %v1327
        %v1395 = vpop.f32.mrb[0].mxu0
        %v1396 = vadd.f32 %v1323, %v1395
        %v1397 = vpop.f32.mrb[0].mxu0
        %1398 = vdwg.mxu0
        %v1399 = vlaneseq
        %v1400 = vand.u32 %v1399, 127
        %v1401 = vstv %s27
        %vm1402 = vcmp.eq.s32.totalorder %v1400, %v1401
        %v1403 = vsel %vm1402, 1, 0
        %v1404 = vcvt.s32.f32 %v1403
        %v1405 = vmul.f32 %v1396, %v1404
        %vm1406 = vcmask 15360
        %v1407 = vsel %vm1406, %v1405, 0.0
        %1408 = vadd.xlane.f32.xlu0 %v1407
        %v1409 = vpop.xlane.xlu0 %1408
        %v1410 = vadd.f32 %v1285, %v1409
        %1411 = vst.msk [vmem:[%s431] sm:$0xff] %vm1058, %v1410
        %s1412 = sand.u32 %s313, 1
        %s1413 = scalar_lea.sflag [#allocation3], %s1412
        %s1414 = sand.u32 %s313, 1
        %s1415 = smul.addr %s1414, 8
        %s1416 = scalar_lea.vmem [#allocation2], %s1415
        // Predicated region
        $region73: #{tpu_custom_call.1} parent=71 // pred_check
          %p1417 = pneg %p323
        $region74: #{tpu_custom_call.1} parent=71 // pred_check_branch
          %1419 = sbr.rel (%p1417) target = $region76
        $region75: #{tpu_custom_call.1} parent=71 // pred_region
          %s1421 = ssub.s32 128, 128
          %1422 = vsyncadd %s1413, %s1421
          %s1423 = smul.addr %s27, 128
          %s1424 = scalar_lea.hbm %s13, %s1423
          %s1426 = sshll.u32 %s1416, 4
          %s1427 = int_to_ptr.vmem [resolvable:$true] %s1426
          %1429 = dma.vmem_to_hbm [thread:$0]  %s1427, 128, %s1424, %s1413
        $region76: #{tpu_custom_call.1} parent=71 // pred_fallthru
          _
      $region72: #{tpu_custom_call.1} parent=5 // pred_fallthru
        _
      %p1430 = scmp.le.s32.totalorder 2, %s22
      // Predicated region
      $region77: #{tpu_custom_call.1} parent=5 // pred_check
        %p1431 = pneg %p1430
      $region78: #{tpu_custom_call.1} parent=5 // pred_check_branch
        %1433 = sbr.rel (%p1431) target = $region80
      $region79: #{tpu_custom_call.1} parent=5 // pred_region
        %s1434 = ssub.s32 %s22, 2
        // Predicated region
        $region81: #{tpu_custom_call.1} parent=79 // pred_check
          %p1435 = pneg %p329
        $region82: #{tpu_custom_call.1} parent=79 // pred_check_branch
          %1437 = sbr.rel (%p1435) target = $region84
        $region83: #{tpu_custom_call.1} parent=79 // pred_region
          %s1438 = sand.u32 %s314, 1
          %s1439 = scalar_lea.sflag [#allocation3], %s1438
          %s1440 = sand.u32 %s314, 1
          %s1441 = smul.addr %s1440, 8
          %s1442 = scalar_lea.vmem [#allocation2], %s1441
          %1443 = dma.done %s1439, 128
        $region84: #{tpu_custom_call.1} parent=79 // pred_fallthru
          _
      $region80: #{tpu_custom_call.1} parent=5 // pred_fallthru
        _
    $region6: #{tpu_custom_call.1} parent=1 // loop_footer
      %s26 = sadd.s32 1, %s22
    $region7: #{tpu_custom_call.1} parent=1 // loop_footer_branch
      %21 = sbr.rel target = $region3
    $region8: #{tpu_custom_call.1} parent=1 // loop_exit
      _
    %1444 = vsyncpa [#allocation3], 1
    %s1445 = scalar_lea.sflag [#allocation3], 1
    %1446 = vsyncpa %s1445, 1

</llo_original>
